<compile_context>
chip_gen: v7x
topology: tpu7x:2x2x1
jax: 0.10.0
libtpu: 0.0.40
codegen_flags: <defaults>
</compile_context>

<pallas_src>
import math
import functools

import jax
import jax.numpy as jnp
from jax.experimental import pallas as pl
from jax.experimental.pallas import tpu as pltpu


def _embed_gather_kernel(ids_ref, w_hbm, o_ref, rows_vmem, sems, *,
                         scale: float, sub: int, nsub: int):
    """One grid step gathers tok_block = sub*nsub embedding rows and scales them.

    ids_ref  : SMEM (n_pad,) int32   -- scalar-prefetched (clamped) token ids
    w_hbm    : (V, E) embedding table left in HBM (memory_space=pl.ANY)
    o_ref    : (tok_block, E) VMEM output block
    rows_vmem: (tok_block, E) VMEM scratch (DMA landing buffer)
    sems     : (nsub,) DMA semaphores, one shared per sub-block
    """
    tok_block = sub * nsub
    base = pl.program_id(0) * tok_block

    # Phase 1: read all token ids from SMEM and launch every row gather.
    # All copies of sub-block s signal sems[s]; they overlap in the DMA engine.
    for s in range(nsub):                       # static unroll
        for t in range(sub):
            r = s * sub + t
            row = ids_ref[base + r]
            pltpu.make_async_copy(w_hbm.at[row], rows_vmem.at[r],
                                  sems.at[s]).start()

    # Phase 2: drain sub-block by sub-block.  The scaled store of sub-block s
    # runs while the DMAs of sub-blocks > s are still in flight.
    for s in range(nsub):                       # static unroll
        for t in range(sub):
            r = s * sub + t
            # Dummy-src descriptor only determines the wait amount / semaphore.
            pltpu.make_async_copy(w_hbm.at[0], rows_vmem.at[r],
                                  sems.at[s]).wait()
        sl = pl.ds(s * sub, sub)
        o_ref[sl, :] = (rows_vmem[sl, :] * scale).astype(o_ref.dtype)


def input_embedding(token_ids: jax.Array, weight: jax.Array, *,
                    tok_block: int = 128, sub: int = 8) -> jax.Array:
    """token_ids: (B, S) int. weight: (V, E). Returns (B, S, E) = W[ids]*sqrt(E)."""
    B, S = token_ids.shape
    V, E = weight.shape
    scale = math.sqrt(float(E))
    N = B * S
    dtype_bytes = jnp.dtype(weight.dtype).itemsize

    # Rows per drain chunk: multiple of 8 (f32 sublane tiling).
    sub = max(8, (sub // 8) * 8)

    # Shrink tok_block for tiny inputs; keep it a multiple of `sub`.
    tok_block = max(sub, min(tok_block, pl.cdiv(N, sub) * sub))
    tok_block = (tok_block // sub) * sub

    # VMEM budget: gather buffer (1x) + pipelined output block (2x); keep the
    # resident footprint safely below v7x's 64 MiB (and v5e/v6e's 128 MiB).
    budget = 24 << 20
    while tok_block > sub and 3 * tok_block * E * dtype_bytes > budget:
        tok_block -= sub
    nsub = tok_block // sub

    n_blocks = pl.cdiv(N, tok_block)
    n_pad = n_blocks * tok_block

    # Clamp ids (OOB ids would issue unchecked HBM gather DMAs) and pad so
    # SMEM reads for the masked partial last output block stay in-bounds.
    ids_flat = jnp.clip(token_ids.reshape(N).astype(jnp.int32), 0, V - 1)
    if n_pad != N:
        ids_flat = jnp.pad(ids_flat, (0, n_pad - N))

    kernel = functools.partial(_embed_gather_kernel,
                               scale=scale, sub=sub, nsub=nsub)

    vmem_limit = int(min(max(4 * tok_block * E * dtype_bytes, 16 << 20),
                         48 << 20))

    out = pl.pallas_call(
        kernel,
        # Exactly (N, E): no wrapper-side slice copy of the result.
        out_shape=jax.ShapeDtypeStruct((N, E), weight.dtype),
        grid_spec=pltpu.PrefetchScalarGridSpec(
            num_scalar_prefetch=1,                        # ids -> SMEM
            grid=(n_blocks,),
            in_specs=[pl.BlockSpec(memory_space=pl.ANY)],  # table stays in HBM
            out_specs=pl.BlockSpec((tok_block, E), lambda i, ids: (i, 0)),
            scratch_shapes=[
                pltpu.VMEM((tok_block, E), weight.dtype),   # gather landing buf
                pltpu.SemaphoreType.DMA((nsub,)),           # one sem per sub-blk
            ],
        ),
        compiler_params=pltpu.CompilerParams(
            dimension_semantics=("parallel",),
            vmem_limit_bytes=vmem_limit,
        ),
        cost_estimate=pl.CostEstimate(
            flops=N * E,
            transcendentals=0,
            bytes_accessed=2 * N * E * dtype_bytes + N * 4,
        ),
    )(ids_flat, weight)

    return out.reshape(B, S, E)


def _reference(token_ids: jax.Array, weight: jax.Array) -> jax.Array:
    E = weight.shape[1]
    return weight[token_ids] * math.sqrt(float(E))


if __name__ == "__main__":
    # Small shapes consistent with the module: batch=2, seq=8, vocab=64, embed=32
    B, S, V, E = 2, 8, 64, 32
    key = jax.random.PRNGKey(0)
    k_ids, k_w = jax.random.split(key)

    token_ids = jax.random.randint(k_ids, (B, S), minval=0, maxval=V,
                                   dtype=jnp.int32)
    weight = jax.random.normal(k_w, (V, E), dtype=jnp.float32)

    out = input_embedding(token_ids, weight)
    out = jax.block_until_ready(out)

    ref = _reference(token_ids, weight)
    assert out.shape == (B, S, E)
    assert jnp.allclose(out, ref, atol=1e-5, rtol=1e-5), "mismatch vs reference"

    print("KERNEL_OK")
</pallas_src>

<mosaic_0001>
module attributes {stable_mosaic.version = 11 : i64} {
  func.func @_embed_gather_kernel(%arg0: i32, %arg1: memref<16xi32, #tpu.memory_space<smem>>, %arg2: memref<64x32xf32, #tpu.memory_space<any>>, %arg3: memref<16x32xf32, #tpu.memory_space<vmem>>, %arg4: memref<16x32xf32, #tpu.memory_space<vmem>>, %arg5: memref<2x!tpu.dma_semaphore, #tpu.memory_space<semaphore_mem>>) attributes {dimension_semantics = [#tpu.dimension_semantics<parallel>], iteration_bounds = array<i64: 1>, scalar_prefetch = 1 : i64, scratch_operands = 2 : i64, tpu.core_type = #tpu.core_type<tc>, window_params = [{}, {transform_indices = @transform_1, window_bounds = array<i64: 16, 32>}]} {
    %c16_i32 = arith.constant 16 : i32
    %0 = arith.muli %arg0, %c16_i32 : i32
    %c0_i32 = arith.constant 0 : i32
    %1 = arith.addi %0, %c0_i32 : i32
    %2 = arith.index_cast %1 : i32 to index
    %3 = memref.load %arg1[%2] : memref<16xi32, #tpu.memory_space<smem>>
    %c0_i32_0 = arith.constant 0 : i32
    %c0_i32_1 = arith.constant 0 : i32
    %c0_i32_2 = arith.constant 0 : i32
    %4 = tpu.memref_slice %arg2[%3, %c0_i32_2] : memref<64x32xf32, #tpu.memory_space<any>> -> memref<1x32xf32, #tpu.memory_space<any>>
    %5 = tpu.memref_squeeze %4 : memref<1x32xf32, #tpu.memory_space<any>> -> memref<32xf32, #tpu.memory_space<any>>
    %c0_i32_3 = arith.constant 0 : i32
    %6 = tpu.memref_slice %arg4[%c0_i32_0, %c0_i32_3] : memref<16x32xf32, #tpu.memory_space<vmem>> -> memref<1x32xf32, #tpu.memory_space<vmem>>
    %7 = tpu.memref_squeeze %6 : memref<1x32xf32, #tpu.memory_space<vmem>> -> memref<32xf32, #tpu.memory_space<vmem>>
    %8 = tpu.memref_slice %arg5[%c0_i32_1] : memref<2x!tpu.dma_semaphore, #tpu.memory_space<semaphore_mem>> -> memref<1x!tpu.dma_semaphore, #tpu.memory_space<semaphore_mem>>
    %9 = tpu.memref_squeeze %8 : memref<1x!tpu.dma_semaphore, #tpu.memory_space<semaphore_mem>> -> memref<!tpu.dma_semaphore, #tpu.memory_space<semaphore_mem>>
    tpu.enqueue_dma source(%5 : memref<32xf32, #tpu.memory_space<any>>) target(%7 : memref<32xf32, #tpu.memory_space<vmem>>) target_semaphore(%9 : memref<!tpu.dma_semaphore, #tpu.memory_space<semaphore_mem>>)
    %c1_i32 = arith.constant 1 : i32
    %10 = arith.addi %0, %c1_i32 : i32
    %11 = arith.index_cast %10 : i32 to index
    %12 = memref.load %arg1[%11] : memref<16xi32, #tpu.memory_space<smem>>
    %c1_i32_4 = arith.constant 1 : i32
    %c0_i32_5 = arith.constant 0 : i32
    %c0_i32_6 = arith.constant 0 : i32
    %13 = tpu.memref_slice %arg2[%12, %c0_i32_6] : memref<64x32xf32, #tpu.memory_space<any>> -> memref<1x32xf32, #tpu.memory_space<any>>
    %14 = tpu.memref_squeeze %13 : memref<1x32xf32, #tpu.memory_space<any>> -> memref<32xf32, #tpu.memory_space<any>>
    %c0_i32_7 = arith.constant 0 : i32
    %15 = tpu.memref_slice %arg4[%c1_i32_4, %c0_i32_7] : memref<16x32xf32, #tpu.memory_space<vmem>> -> memref<1x32xf32, #tpu.memory_space<vmem>>
    %16 = tpu.memref_squeeze %15 : memref<1x32xf32, #tpu.memory_space<vmem>> -> memref<32xf32, #tpu.memory_space<vmem>>
    %17 = tpu.memref_slice %arg5[%c0_i32_5] : memref<2x!tpu.dma_semaphore, #tpu.memory_space<semaphore_mem>> -> memref<1x!tpu.dma_semaphore, #tpu.memory_space<semaphore_mem>>
    %18 = tpu.memref_squeeze %17 : memref<1x!tpu.dma_semaphore, #tpu.memory_space<semaphore_mem>> -> memref<!tpu.dma_semaphore, #tpu.memory_space<semaphore_mem>>
    tpu.enqueue_dma source(%14 : memref<32xf32, #tpu.memory_space<any>>) target(%16 : memref<32xf32, #tpu.memory_space<vmem>>) target_semaphore(%18 : memref<!tpu.dma_semaphore, #tpu.memory_space<semaphore_mem>>)
    %c2_i32 = arith.constant 2 : i32
    %19 = arith.addi %0, %c2_i32 : i32
    %20 = arith.index_cast %19 : i32 to index
    %21 = memref.load %arg1[%20] : memref<16xi32, #tpu.memory_space<smem>>
    %c2_i32_8 = arith.constant 2 : i32
    %c0_i32_9 = arith.constant 0 : i32
    %c0_i32_10 = arith.constant 0 : i32
    %22 = tpu.memref_slice %arg2[%21, %c0_i32_10] : memref<64x32xf32, #tpu.memory_space<any>> -> memref<1x32xf32, #tpu.memory_space<any>>
    %23 = tpu.memref_squeeze %22 : memref<1x32xf32, #tpu.memory_space<any>> -> memref<32xf32, #tpu.memory_space<any>>
    %c0_i32_11 = arith.constant 0 : i32
    %24 = tpu.memref_slice %arg4[%c2_i32_8, %c0_i32_11] : memref<16x32xf32, #tpu.memory_space<vmem>> -> memref<1x32xf32, #tpu.memory_space<vmem>>
    %25 = tpu.memref_squeeze %24 : memref<1x32xf32, #tpu.memory_space<vmem>> -> memref<32xf32, #tpu.memory_space<vmem>>
    %26 = tpu.memref_slice %arg5[%c0_i32_9] : memref<2x!tpu.dma_semaphore, #tpu.memory_space<semaphore_mem>> -> memref<1x!tpu.dma_semaphore, #tpu.memory_space<semaphore_mem>>
    %27 = tpu.memref_squeeze %26 : memref<1x!tpu.dma_semaphore, #tpu.memory_space<semaphore_mem>> -> memref<!tpu.dma_semaphore, #tpu.memory_space<semaphore_mem>>
    tpu.enqueue_dma source(%23 : memref<32xf32, #tpu.memory_space<any>>) target(%25 : memref<32xf32, #tpu.memory_space<vmem>>) target_semaphore(%27 : memref<!tpu.dma_semaphore, #tpu.memory_space<semaphore_mem>>)
    %c3_i32 = arith.constant 3 : i32
    %28 = arith.addi %0, %c3_i32 : i32
    %29 = arith.index_cast %28 : i32 to index
    %30 = memref.load %arg1[%29] : memref<16xi32, #tpu.memory_space<smem>>
    %c3_i32_12 = arith.constant 3 : i32
    %c0_i32_13 = arith.constant 0 : i32
    %c0_i32_14 = arith.constant 0 : i32
    %31 = tpu.memref_slice %arg2[%30, %c0_i32_14] : memref<64x32xf32, #tpu.memory_space<any>> -> memref<1x32xf32, #tpu.memory_space<any>>
    %32 = tpu.memref_squeeze %31 : memref<1x32xf32, #tpu.memory_space<any>> -> memref<32xf32, #tpu.memory_space<any>>
    %c0_i32_15 = arith.constant 0 : i32
    %33 = tpu.memref_slice %arg4[%c3_i32_12, %c0_i32_15] : memref<16x32xf32, #tpu.memory_space<vmem>> -> memref<1x32xf32, #tpu.memory_space<vmem>>
    %34 = tpu.memref_squeeze %33 : memref<1x32xf32, #tpu.memory_space<vmem>> -> memref<32xf32, #tpu.memory_space<vmem>>
    %35 = tpu.memref_slice %arg5[%c0_i32_13] : memref<2x!tpu.dma_semaphore, #tpu.memory_space<semaphore_mem>> -> memref<1x!tpu.dma_semaphore, #tpu.memory_space<semaphore_mem>>
    %36 = tpu.memref_squeeze %35 : memref<1x!tpu.dma_semaphore, #tpu.memory_space<semaphore_mem>> -> memref<!tpu.dma_semaphore, #tpu.memory_space<semaphore_mem>>
    tpu.enqueue_dma source(%32 : memref<32xf32, #tpu.memory_space<any>>) target(%34 : memref<32xf32, #tpu.memory_space<vmem>>) target_semaphore(%36 : memref<!tpu.dma_semaphore, #tpu.memory_space<semaphore_mem>>)
    %c4_i32 = arith.constant 4 : i32
    %37 = arith.addi %0, %c4_i32 : i32
    %38 = arith.index_cast %37 : i32 to index
    %39 = memref.load %arg1[%38] : memref<16xi32, #tpu.memory_space<smem>>
    %c4_i32_16 = arith.constant 4 : i32
    %c0_i32_17 = arith.constant 0 : i32
    %c0_i32_18 = arith.constant 0 : i32
    %40 = tpu.memref_slice %arg2[%39, %c0_i32_18] : memref<64x32xf32, #tpu.memory_space<any>> -> memref<1x32xf32, #tpu.memory_space<any>>
    %41 = tpu.memref_squeeze %40 : memref<1x32xf32, #tpu.memory_space<any>> -> memref<32xf32, #tpu.memory_space<any>>
    %c0_i32_19 = arith.constant 0 : i32
    %42 = tpu.memref_slice %arg4[%c4_i32_16, %c0_i32_19] : memref<16x32xf32, #tpu.memory_space<vmem>> -> memref<1x32xf32, #tpu.memory_space<vmem>>
    %43 = tpu.memref_squeeze %42 : memref<1x32xf32, #tpu.memory_space<vmem>> -> memref<32xf32, #tpu.memory_space<vmem>>
    %44 = tpu.memref_slice %arg5[%c0_i32_17] : memref<2x!tpu.dma_semaphore, #tpu.memory_space<semaphore_mem>> -> memref<1x!tpu.dma_semaphore, #tpu.memory_space<semaphore_mem>>
    %45 = tpu.memref_squeeze %44 : memref<1x!tpu.dma_semaphore, #tpu.memory_space<semaphore_mem>> -> memref<!tpu.dma_semaphore, #tpu.memory_space<semaphore_mem>>
    tpu.enqueue_dma source(%41 : memref<32xf32, #tpu.memory_space<any>>) target(%43 : memref<32xf32, #tpu.memory_space<vmem>>) target_semaphore(%45 : memref<!tpu.dma_semaphore, #tpu.memory_space<semaphore_mem>>)
    %c5_i32 = arith.constant 5 : i32
    %46 = arith.addi %0, %c5_i32 : i32
    %47 = arith.index_cast %46 : i32 to index
    %48 = memref.load %arg1[%47] : memref<16xi32, #tpu.memory_space<smem>>
    %c5_i32_20 = arith.constant 5 : i32
    %c0_i32_21 = arith.constant 0 : i32
    %c0_i32_22 = arith.constant 0 : i32
    %49 = tpu.memref_slice %arg2[%48, %c0_i32_22] : memref<64x32xf32, #tpu.memory_space<any>> -> memref<1x32xf32, #tpu.memory_space<any>>
    %50 = tpu.memref_squeeze %49 : memref<1x32xf32, #tpu.memory_space<any>> -> memref<32xf32, #tpu.memory_space<any>>
    %c0_i32_23 = arith.constant 0 : i32
    %51 = tpu.memref_slice %arg4[%c5_i32_20, %c0_i32_23] : memref<16x32xf32, #tpu.memory_space<vmem>> -> memref<1x32xf32, #tpu.memory_space<vmem>>
    %52 = tpu.memref_squeeze %51 : memref<1x32xf32, #tpu.memory_space<vmem>> -> memref<32xf32, #tpu.memory_space<vmem>>
    %53 = tpu.memref_slice %arg5[%c0_i32_21] : memref<2x!tpu.dma_semaphore, #tpu.memory_space<semaphore_mem>> -> memref<1x!tpu.dma_semaphore, #tpu.memory_space<semaphore_mem>>
    %54 = tpu.memref_squeeze %53 : memref<1x!tpu.dma_semaphore, #tpu.memory_space<semaphore_mem>> -> memref<!tpu.dma_semaphore, #tpu.memory_space<semaphore_mem>>
    tpu.enqueue_dma source(%50 : memref<32xf32, #tpu.memory_space<any>>) target(%52 : memref<32xf32, #tpu.memory_space<vmem>>) target_semaphore(%54 : memref<!tpu.dma_semaphore, #tpu.memory_space<semaphore_mem>>)
    %c6_i32 = arith.constant 6 : i32
    %55 = arith.addi %0, %c6_i32 : i32
    %56 = arith.index_cast %55 : i32 to index
    %57 = memref.load %arg1[%56] : memref<16xi32, #tpu.memory_space<smem>>
    %c6_i32_24 = arith.constant 6 : i32
    %c0_i32_25 = arith.constant 0 : i32
    %c0_i32_26 = arith.constant 0 : i32
    %58 = tpu.memref_slice %arg2[%57, %c0_i32_26] : memref<64x32xf32, #tpu.memory_space<any>> -> memref<1x32xf32, #tpu.memory_space<any>>
    %59 = tpu.memref_squeeze %58 : memref<1x32xf32, #tpu.memory_space<any>> -> memref<32xf32, #tpu.memory_space<any>>
    %c0_i32_27 = arith.constant 0 : i32
    %60 = tpu.memref_slice %arg4[%c6_i32_24, %c0_i32_27] : memref<16x32xf32, #tpu.memory_space<vmem>> -> memref<1x32xf32, #tpu.memory_space<vmem>>
    %61 = tpu.memref_squeeze %60 : memref<1x32xf32, #tpu.memory_space<vmem>> -> memref<32xf32, #tpu.memory_space<vmem>>
    %62 = tpu.memref_slice %arg5[%c0_i32_25] : memref<2x!tpu.dma_semaphore, #tpu.memory_space<semaphore_mem>> -> memref<1x!tpu.dma_semaphore, #tpu.memory_space<semaphore_mem>>
    %63 = tpu.memref_squeeze %62 : memref<1x!tpu.dma_semaphore, #tpu.memory_space<semaphore_mem>> -> memref<!tpu.dma_semaphore, #tpu.memory_space<semaphore_mem>>
    tpu.enqueue_dma source(%59 : memref<32xf32, #tpu.memory_space<any>>) target(%61 : memref<32xf32, #tpu.memory_space<vmem>>) target_semaphore(%63 : memref<!tpu.dma_semaphore, #tpu.memory_space<semaphore_mem>>)
    %c7_i32 = arith.constant 7 : i32
    %64 = arith.addi %0, %c7_i32 : i32
    %65 = arith.index_cast %64 : i32 to index
    %66 = memref.load %arg1[%65] : memref<16xi32, #tpu.memory_space<smem>>
    %c7_i32_28 = arith.constant 7 : i32
    %c0_i32_29 = arith.constant 0 : i32
    %c0_i32_30 = arith.constant 0 : i32
    %67 = tpu.memref_slice %arg2[%66, %c0_i32_30] : memref<64x32xf32, #tpu.memory_space<any>> -> memref<1x32xf32, #tpu.memory_space<any>>
    %68 = tpu.memref_squeeze %67 : memref<1x32xf32, #tpu.memory_space<any>> -> memref<32xf32, #tpu.memory_space<any>>
    %c0_i32_31 = arith.constant 0 : i32
    %69 = tpu.memref_slice %arg4[%c7_i32_28, %c0_i32_31] : memref<16x32xf32, #tpu.memory_space<vmem>> -> memref<1x32xf32, #tpu.memory_space<vmem>>
    %70 = tpu.memref_squeeze %69 : memref<1x32xf32, #tpu.memory_space<vmem>> -> memref<32xf32, #tpu.memory_space<vmem>>
    %71 = tpu.memref_slice %arg5[%c0_i32_29] : memref<2x!tpu.dma_semaphore, #tpu.memory_space<semaphore_mem>> -> memref<1x!tpu.dma_semaphore, #tpu.memory_space<semaphore_mem>>
    %72 = tpu.memref_squeeze %71 : memref<1x!tpu.dma_semaphore, #tpu.memory_space<semaphore_mem>> -> memref<!tpu.dma_semaphore, #tpu.memory_space<semaphore_mem>>
    tpu.enqueue_dma source(%68 : memref<32xf32, #tpu.memory_space<any>>) target(%70 : memref<32xf32, #tpu.memory_space<vmem>>) target_semaphore(%72 : memref<!tpu.dma_semaphore, #tpu.memory_space<semaphore_mem>>)
    %c8_i32 = arith.constant 8 : i32
    %73 = arith.addi %0, %c8_i32 : i32
    %74 = arith.index_cast %73 : i32 to index
    %75 = memref.load %arg1[%74] : memref<16xi32, #tpu.memory_space<smem>>
    %c8_i32_32 = arith.constant 8 : i32
    %c1_i32_33 = arith.constant 1 : i32
    %c0_i32_34 = arith.constant 0 : i32
    %76 = tpu.memref_slice %arg2[%75, %c0_i32_34] : memref<64x32xf32, #tpu.memory_space<any>> -> memref<1x32xf32, #tpu.memory_space<any>>
    %77 = tpu.memref_squeeze %76 : memref<1x32xf32, #tpu.memory_space<any>> -> memref<32xf32, #tpu.memory_space<any>>
    %c0_i32_35 = arith.constant 0 : i32
    %78 = tpu.memref_slice %arg4[%c8_i32_32, %c0_i32_35] : memref<16x32xf32, #tpu.memory_space<vmem>> -> memref<1x32xf32, #tpu.memory_space<vmem>>
    %79 = tpu.memref_squeeze %78 : memref<1x32xf32, #tpu.memory_space<vmem>> -> memref<32xf32, #tpu.memory_space<vmem>>
    %80 = tpu.memref_slice %arg5[%c1_i32_33] : memref<2x!tpu.dma_semaphore, #tpu.memory_space<semaphore_mem>> -> memref<1x!tpu.dma_semaphore, #tpu.memory_space<semaphore_mem>>
    %81 = tpu.memref_squeeze %80 : memref<1x!tpu.dma_semaphore, #tpu.memory_space<semaphore_mem>> -> memref<!tpu.dma_semaphore, #tpu.memory_space<semaphore_mem>>
    tpu.enqueue_dma source(%77 : memref<32xf32, #tpu.memory_space<any>>) target(%79 : memref<32xf32, #tpu.memory_space<vmem>>) target_semaphore(%81 : memref<!tpu.dma_semaphore, #tpu.memory_space<semaphore_mem>>)
    %c9_i32 = arith.constant 9 : i32
    %82 = arith.addi %0, %c9_i32 : i32
    %83 = arith.index_cast %82 : i32 to index
    %84 = memref.load %arg1[%83] : memref<16xi32, #tpu.memory_space<smem>>
    %c9_i32_36 = arith.constant 9 : i32
    %c1_i32_37 = arith.constant 1 : i32
    %c0_i32_38 = arith.constant 0 : i32
    %85 = tpu.memref_slice %arg2[%84, %c0_i32_38] : memref<64x32xf32, #tpu.memory_space<any>> -> memref<1x32xf32, #tpu.memory_space<any>>
    %86 = tpu.memref_squeeze %85 : memref<1x32xf32, #tpu.memory_space<any>> -> memref<32xf32, #tpu.memory_space<any>>
    %c0_i32_39 = arith.constant 0 : i32
    %87 = tpu.memref_slice %arg4[%c9_i32_36, %c0_i32_39] : memref<16x32xf32, #tpu.memory_space<vmem>> -> memref<1x32xf32, #tpu.memory_space<vmem>>
    %88 = tpu.memref_squeeze %87 : memref<1x32xf32, #tpu.memory_space<vmem>> -> memref<32xf32, #tpu.memory_space<vmem>>
    %89 = tpu.memref_slice %arg5[%c1_i32_37] : memref<2x!tpu.dma_semaphore, #tpu.memory_space<semaphore_mem>> -> memref<1x!tpu.dma_semaphore, #tpu.memory_space<semaphore_mem>>
    %90 = tpu.memref_squeeze %89 : memref<1x!tpu.dma_semaphore, #tpu.memory_space<semaphore_mem>> -> memref<!tpu.dma_semaphore, #tpu.memory_space<semaphore_mem>>
    tpu.enqueue_dma source(%86 : memref<32xf32, #tpu.memory_space<any>>) target(%88 : memref<32xf32, #tpu.memory_space<vmem>>) target_semaphore(%90 : memref<!tpu.dma_semaphore, #tpu.memory_space<semaphore_mem>>)
    %c10_i32 = arith.constant 10 : i32
    %91 = arith.addi %0, %c10_i32 : i32
    %92 = arith.index_cast %91 : i32 to index
    %93 = memref.load %arg1[%92] : memref<16xi32, #tpu.memory_space<smem>>
    %c10_i32_40 = arith.constant 10 : i32
    %c1_i32_41 = arith.constant 1 : i32
    %c0_i32_42 = arith.constant 0 : i32
    %94 = tpu.memref_slice %arg2[%93, %c0_i32_42] : memref<64x32xf32, #tpu.memory_space<any>> -> memref<1x32xf32, #tpu.memory_space<any>>
    %95 = tpu.memref_squeeze %94 : memref<1x32xf32, #tpu.memory_space<any>> -> memref<32xf32, #tpu.memory_space<any>>
    %c0_i32_43 = arith.constant 0 : i32
    %96 = tpu.memref_slice %arg4[%c10_i32_40, %c0_i32_43] : memref<16x32xf32, #tpu.memory_space<vmem>> -> memref<1x32xf32, #tpu.memory_space<vmem>>
    %97 = tpu.memref_squeeze %96 : memref<1x32xf32, #tpu.memory_space<vmem>> -> memref<32xf32, #tpu.memory_space<vmem>>
    %98 = tpu.memref_slice %arg5[%c1_i32_41] : memref<2x!tpu.dma_semaphore, #tpu.memory_space<semaphore_mem>> -> memref<1x!tpu.dma_semaphore, #tpu.memory_space<semaphore_mem>>
    %99 = tpu.memref_squeeze %98 : memref<1x!tpu.dma_semaphore, #tpu.memory_space<semaphore_mem>> -> memref<!tpu.dma_semaphore, #tpu.memory_space<semaphore_mem>>
    tpu.enqueue_dma source(%95 : memref<32xf32, #tpu.memory_space<any>>) target(%97 : memref<32xf32, #tpu.memory_space<vmem>>) target_semaphore(%99 : memref<!tpu.dma_semaphore, #tpu.memory_space<semaphore_mem>>)
    %c11_i32 = arith.constant 11 : i32
    %100 = arith.addi %0, %c11_i32 : i32
    %101 = arith.index_cast %100 : i32 to index
    %102 = memref.load %arg1[%101] : memref<16xi32, #tpu.memory_space<smem>>
    %c11_i32_44 = arith.constant 11 : i32
    %c1_i32_45 = arith.constant 1 : i32
    %c0_i32_46 = arith.constant 0 : i32
    %103 = tpu.memref_slice %arg2[%102, %c0_i32_46] : memref<64x32xf32, #tpu.memory_space<any>> -> memref<1x32xf32, #tpu.memory_space<any>>
    %104 = tpu.memref_squeeze %103 : memref<1x32xf32, #tpu.memory_space<any>> -> memref<32xf32, #tpu.memory_space<any>>
    %c0_i32_47 = arith.constant 0 : i32
    %105 = tpu.memref_slice %arg4[%c11_i32_44, %c0_i32_47] : memref<16x32xf32, #tpu.memory_space<vmem>> -> memref<1x32xf32, #tpu.memory_space<vmem>>
    %106 = tpu.memref_squeeze %105 : memref<1x32xf32, #tpu.memory_space<vmem>> -> memref<32xf32, #tpu.memory_space<vmem>>
    %107 = tpu.memref_slice %arg5[%c1_i32_45] : memref<2x!tpu.dma_semaphore, #tpu.memory_space<semaphore_mem>> -> memref<1x!tpu.dma_semaphore, #tpu.memory_space<semaphore_mem>>
    %108 = tpu.memref_squeeze %107 : memref<1x!tpu.dma_semaphore, #tpu.memory_space<semaphore_mem>> -> memref<!tpu.dma_semaphore, #tpu.memory_space<semaphore_mem>>
    tpu.enqueue_dma source(%104 : memref<32xf32, #tpu.memory_space<any>>) target(%106 : memref<32xf32, #tpu.memory_space<vmem>>) target_semaphore(%108 : memref<!tpu.dma_semaphore, #tpu.memory_space<semaphore_mem>>)
    %c12_i32 = arith.constant 12 : i32
    %109 = arith.addi %0, %c12_i32 : i32
    %110 = arith.index_cast %109 : i32 to index
    %111 = memref.load %arg1[%110] : memref<16xi32, #tpu.memory_space<smem>>
    %c12_i32_48 = arith.constant 12 : i32
    %c1_i32_49 = arith.constant 1 : i32
    %c0_i32_50 = arith.constant 0 : i32
    %112 = tpu.memref_slice %arg2[%111, %c0_i32_50] : memref<64x32xf32, #tpu.memory_space<any>> -> memref<1x32xf32, #tpu.memory_space<any>>
    %113 = tpu.memref_squeeze %112 : memref<1x32xf32, #tpu.memory_space<any>> -> memref<32xf32, #tpu.memory_space<any>>
    %c0_i32_51 = arith.constant 0 : i32
    %114 = tpu.memref_slice %arg4[%c12_i32_48, %c0_i32_51] : memref<16x32xf32, #tpu.memory_space<vmem>> -> memref<1x32xf32, #tpu.memory_space<vmem>>
    %115 = tpu.memref_squeeze %114 : memref<1x32xf32, #tpu.memory_space<vmem>> -> memref<32xf32, #tpu.memory_space<vmem>>
    %116 = tpu.memref_slice %arg5[%c1_i32_49] : memref<2x!tpu.dma_semaphore, #tpu.memory_space<semaphore_mem>> -> memref<1x!tpu.dma_semaphore, #tpu.memory_space<semaphore_mem>>
    %117 = tpu.memref_squeeze %116 : memref<1x!tpu.dma_semaphore, #tpu.memory_space<semaphore_mem>> -> memref<!tpu.dma_semaphore, #tpu.memory_space<semaphore_mem>>
    tpu.enqueue_dma source(%113 : memref<32xf32, #tpu.memory_space<any>>) target(%115 : memref<32xf32, #tpu.memory_space<vmem>>) target_semaphore(%117 : memref<!tpu.dma_semaphore, #tpu.memory_space<semaphore_mem>>)
    %c13_i32 = arith.constant 13 : i32
    %118 = arith.addi %0, %c13_i32 : i32
    %119 = arith.index_cast %118 : i32 to index
    %120 = memref.load %arg1[%119] : memref<16xi32, #tpu.memory_space<smem>>
    %c13_i32_52 = arith.constant 13 : i32
    %c1_i32_53 = arith.constant 1 : i32
    %c0_i32_54 = arith.constant 0 : i32
    %121 = tpu.memref_slice %arg2[%120, %c0_i32_54] : memref<64x32xf32, #tpu.memory_space<any>> -> memref<1x32xf32, #tpu.memory_space<any>>
    %122 = tpu.memref_squeeze %121 : memref<1x32xf32, #tpu.memory_space<any>> -> memref<32xf32, #tpu.memory_space<any>>
    %c0_i32_55 = arith.constant 0 : i32
    %123 = tpu.memref_slice %arg4[%c13_i32_52, %c0_i32_55] : memref<16x32xf32, #tpu.memory_space<vmem>> -> memref<1x32xf32, #tpu.memory_space<vmem>>
    %124 = tpu.memref_squeeze %123 : memref<1x32xf32, #tpu.memory_space<vmem>> -> memref<32xf32, #tpu.memory_space<vmem>>
    %125 = tpu.memref_slice %arg5[%c1_i32_53] : memref<2x!tpu.dma_semaphore, #tpu.memory_space<semaphore_mem>> -> memref<1x!tpu.dma_semaphore, #tpu.memory_space<semaphore_mem>>
    %126 = tpu.memref_squeeze %125 : memref<1x!tpu.dma_semaphore, #tpu.memory_space<semaphore_mem>> -> memref<!tpu.dma_semaphore, #tpu.memory_space<semaphore_mem>>
    tpu.enqueue_dma source(%122 : memref<32xf32, #tpu.memory_space<any>>) target(%124 : memref<32xf32, #tpu.memory_space<vmem>>) target_semaphore(%126 : memref<!tpu.dma_semaphore, #tpu.memory_space<semaphore_mem>>)
    %c14_i32 = arith.constant 14 : i32
    %127 = arith.addi %0, %c14_i32 : i32
    %128 = arith.index_cast %127 : i32 to index
    %129 = memref.load %arg1[%128] : memref<16xi32, #tpu.memory_space<smem>>
    %c14_i32_56 = arith.constant 14 : i32
    %c1_i32_57 = arith.constant 1 : i32
    %c0_i32_58 = arith.constant 0 : i32
    %130 = tpu.memref_slice %arg2[%129, %c0_i32_58] : memref<64x32xf32, #tpu.memory_space<any>> -> memref<1x32xf32, #tpu.memory_space<any>>
    %131 = tpu.memref_squeeze %130 : memref<1x32xf32, #tpu.memory_space<any>> -> memref<32xf32, #tpu.memory_space<any>>
    %c0_i32_59 = arith.constant 0 : i32
    %132 = tpu.memref_slice %arg4[%c14_i32_56, %c0_i32_59] : memref<16x32xf32, #tpu.memory_space<vmem>> -> memref<1x32xf32, #tpu.memory_space<vmem>>
    %133 = tpu.memref_squeeze %132 : memref<1x32xf32, #tpu.memory_space<vmem>> -> memref<32xf32, #tpu.memory_space<vmem>>
    %134 = tpu.memref_slice %arg5[%c1_i32_57] : memref<2x!tpu.dma_semaphore, #tpu.memory_space<semaphore_mem>> -> memref<1x!tpu.dma_semaphore, #tpu.memory_space<semaphore_mem>>
    %135 = tpu.memref_squeeze %134 : memref<1x!tpu.dma_semaphore, #tpu.memory_space<semaphore_mem>> -> memref<!tpu.dma_semaphore, #tpu.memory_space<semaphore_mem>>
    tpu.enqueue_dma source(%131 : memref<32xf32, #tpu.memory_space<any>>) target(%133 : memref<32xf32, #tpu.memory_space<vmem>>) target_semaphore(%135 : memref<!tpu.dma_semaphore, #tpu.memory_space<semaphore_mem>>)
    %c15_i32 = arith.constant 15 : i32
    %136 = arith.addi %0, %c15_i32 : i32
    %137 = arith.index_cast %136 : i32 to index
    %138 = memref.load %arg1[%137] : memref<16xi32, #tpu.memory_space<smem>>
    %c15_i32_60 = arith.constant 15 : i32
    %c1_i32_61 = arith.constant 1 : i32
    %c0_i32_62 = arith.constant 0 : i32
    %139 = tpu.memref_slice %arg2[%138, %c0_i32_62] : memref<64x32xf32, #tpu.memory_space<any>> -> memref<1x32xf32, #tpu.memory_space<any>>
    %140 = tpu.memref_squeeze %139 : memref<1x32xf32, #tpu.memory_space<any>> -> memref<32xf32, #tpu.memory_space<any>>
    %c0_i32_63 = arith.constant 0 : i32
    %141 = tpu.memref_slice %arg4[%c15_i32_60, %c0_i32_63] : memref<16x32xf32, #tpu.memory_space<vmem>> -> memref<1x32xf32, #tpu.memory_space<vmem>>
    %142 = tpu.memref_squeeze %141 : memref<1x32xf32, #tpu.memory_space<vmem>> -> memref<32xf32, #tpu.memory_space<vmem>>
    %143 = tpu.memref_slice %arg5[%c1_i32_61] : memref<2x!tpu.dma_semaphore, #tpu.memory_space<semaphore_mem>> -> memref<1x!tpu.dma_semaphore, #tpu.memory_space<semaphore_mem>>
    %144 = tpu.memref_squeeze %143 : memref<1x!tpu.dma_semaphore, #tpu.memory_space<semaphore_mem>> -> memref<!tpu.dma_semaphore, #tpu.memory_space<semaphore_mem>>
    tpu.enqueue_dma source(%140 : memref<32xf32, #tpu.memory_space<any>>) target(%142 : memref<32xf32, #tpu.memory_space<vmem>>) target_semaphore(%144 : memref<!tpu.dma_semaphore, #tpu.memory_space<semaphore_mem>>)
    %c0_i32_64 = arith.constant 0 : i32
    %c0_i32_65 = arith.constant 0 : i32
    %c0_i32_66 = arith.constant 0 : i32
    %c0_i32_67 = arith.constant 0 : i32
    %145 = tpu.memref_slice %arg2[%c0_i32_64, %c0_i32_67] : memref<64x32xf32, #tpu.memory_space<any>> -> memref<1x32xf32, #tpu.memory_space<any>>
    %146 = tpu.memref_squeeze %145 : memref<1x32xf32, #tpu.memory_space<any>> -> memref<32xf32, #tpu.memory_space<any>>
    %c0_i32_68 = arith.constant 0 : i32
    %147 = tpu.memref_slice %arg4[%c0_i32_65, %c0_i32_68] : memref<16x32xf32, #tpu.memory_space<vmem>> -> memref<1x32xf32, #tpu.memory_space<vmem>>
    %148 = tpu.memref_squeeze %147 : memref<1x32xf32, #tpu.memory_space<vmem>> -> memref<32xf32, #tpu.memory_space<vmem>>
    %149 = tpu.memref_slice %arg5[%c0_i32_66] : memref<2x!tpu.dma_semaphore, #tpu.memory_space<semaphore_mem>> -> memref<1x!tpu.dma_semaphore, #tpu.memory_space<semaphore_mem>>
    %150 = tpu.memref_squeeze %149 : memref<1x!tpu.dma_semaphore, #tpu.memory_space<semaphore_mem>> -> memref<!tpu.dma_semaphore, #tpu.memory_space<semaphore_mem>>
    tpu.wait_dma2 semaphore(%150 : memref<!tpu.dma_semaphore, #tpu.memory_space<semaphore_mem>>) src(%146 : memref<32xf32, #tpu.memory_space<any>>) dst(%148 : memref<32xf32, #tpu.memory_space<vmem>>)
    %c0_i32_69 = arith.constant 0 : i32
    %c1_i32_70 = arith.constant 1 : i32
    %c0_i32_71 = arith.constant 0 : i32
    %c0_i32_72 = arith.constant 0 : i32
    %151 = tpu.memref_slice %arg2[%c0_i32_69, %c0_i32_72] : memref<64x32xf32, #tpu.memory_space<any>> -> memref<1x32xf32, #tpu.memory_space<any>>
    %152 = tpu.memref_squeeze %151 : memref<1x32xf32, #tpu.memory_space<any>> -> memref<32xf32, #tpu.memory_space<any>>
    %c0_i32_73 = arith.constant 0 : i32
    %153 = tpu.memref_slice %arg4[%c1_i32_70, %c0_i32_73] : memref<16x32xf32, #tpu.memory_space<vmem>> -> memref<1x32xf32, #tpu.memory_space<vmem>>
    %154 = tpu.memref_squeeze %153 : memref<1x32xf32, #tpu.memory_space<vmem>> -> memref<32xf32, #tpu.memory_space<vmem>>
    %155 = tpu.memref_slice %arg5[%c0_i32_71] : memref<2x!tpu.dma_semaphore, #tpu.memory_space<semaphore_mem>> -> memref<1x!tpu.dma_semaphore, #tpu.memory_space<semaphore_mem>>
    %156 = tpu.memref_squeeze %155 : memref<1x!tpu.dma_semaphore, #tpu.memory_space<semaphore_mem>> -> memref<!tpu.dma_semaphore, #tpu.memory_space<semaphore_mem>>
    tpu.wait_dma2 semaphore(%156 : memref<!tpu.dma_semaphore, #tpu.memory_space<semaphore_mem>>) src(%152 : memref<32xf32, #tpu.memory_space<any>>) dst(%154 : memref<32xf32, #tpu.memory_space<vmem>>)
    %c0_i32_74 = arith.constant 0 : i32
    %c2_i32_75 = arith.constant 2 : i32
    %c0_i32_76 = arith.constant 0 : i32
    %c0_i32_77 = arith.constant 0 : i32
    %157 = tpu.memref_slice %arg2[%c0_i32_74, %c0_i32_77] : memref<64x32xf32, #tpu.memory_space<any>> -> memref<1x32xf32, #tpu.memory_space<any>>
    %158 = tpu.memref_squeeze %157 : memref<1x32xf32, #tpu.memory_space<any>> -> memref<32xf32, #tpu.memory_space<any>>
    %c0_i32_78 = arith.constant 0 : i32
    %159 = tpu.memref_slice %arg4[%c2_i32_75, %c0_i32_78] : memref<16x32xf32, #tpu.memory_space<vmem>> -> memref<1x32xf32, #tpu.memory_space<vmem>>
    %160 = tpu.memref_squeeze %159 : memref<1x32xf32, #tpu.memory_space<vmem>> -> memref<32xf32, #tpu.memory_space<vmem>>
    %161 = tpu.memref_slice %arg5[%c0_i32_76] : memref<2x!tpu.dma_semaphore, #tpu.memory_space<semaphore_mem>> -> memref<1x!tpu.dma_semaphore, #tpu.memory_space<semaphore_mem>>
    %162 = tpu.memref_squeeze %161 : memref<1x!tpu.dma_semaphore, #tpu.memory_space<semaphore_mem>> -> memref<!tpu.dma_semaphore, #tpu.memory_space<semaphore_mem>>
    tpu.wait_dma2 semaphore(%162 : memref<!tpu.dma_semaphore, #tpu.memory_space<semaphore_mem>>) src(%158 : memref<32xf32, #tpu.memory_space<any>>) dst(%160 : memref<32xf32, #tpu.memory_space<vmem>>)
    %c0_i32_79 = arith.constant 0 : i32
    %c3_i32_80 = arith.constant 3 : i32
    %c0_i32_81 = arith.constant 0 : i32
    %c0_i32_82 = arith.constant 0 : i32
    %163 = tpu.memref_slice %arg2[%c0_i32_79, %c0_i32_82] : memref<64x32xf32, #tpu.memory_space<any>> -> memref<1x32xf32, #tpu.memory_space<any>>
    %164 = tpu.memref_squeeze %163 : memref<1x32xf32, #tpu.memory_space<any>> -> memref<32xf32, #tpu.memory_space<any>>
    %c0_i32_83 = arith.constant 0 : i32
    %165 = tpu.memref_slice %arg4[%c3_i32_80, %c0_i32_83] : memref<16x32xf32, #tpu.memory_space<vmem>> -> memref<1x32xf32, #tpu.memory_space<vmem>>
    %166 = tpu.memref_squeeze %165 : memref<1x32xf32, #tpu.memory_space<vmem>> -> memref<32xf32, #tpu.memory_space<vmem>>
    %167 = tpu.memref_slice %arg5[%c0_i32_81] : memref<2x!tpu.dma_semaphore, #tpu.memory_space<semaphore_mem>> -> memref<1x!tpu.dma_semaphore, #tpu.memory_space<semaphore_mem>>
    %168 = tpu.memref_squeeze %167 : memref<1x!tpu.dma_semaphore, #tpu.memory_space<semaphore_mem>> -> memref<!tpu.dma_semaphore, #tpu.memory_space<semaphore_mem>>
    tpu.wait_dma2 semaphore(%168 : memref<!tpu.dma_semaphore, #tpu.memory_space<semaphore_mem>>) src(%164 : memref<32xf32, #tpu.memory_space<any>>) dst(%166 : memref<32xf32, #tpu.memory_space<vmem>>)
    %c0_i32_84 = arith.constant 0 : i32
    %c4_i32_85 = arith.constant 4 : i32
    %c0_i32_86 = arith.constant 0 : i32
    %c0_i32_87 = arith.constant 0 : i32
    %169 = tpu.memref_slice %arg2[%c0_i32_84, %c0_i32_87] : memref<64x32xf32, #tpu.memory_space<any>> -> memref<1x32xf32, #tpu.memory_space<any>>
    %170 = tpu.memref_squeeze %169 : memref<1x32xf32, #tpu.memory_space<any>> -> memref<32xf32, #tpu.memory_space<any>>
    %c0_i32_88 = arith.constant 0 : i32
    %171 = tpu.memref_slice %arg4[%c4_i32_85, %c0_i32_88] : memref<16x32xf32, #tpu.memory_space<vmem>> -> memref<1x32xf32, #tpu.memory_space<vmem>>
    %172 = tpu.memref_squeeze %171 : memref<1x32xf32, #tpu.memory_space<vmem>> -> memref<32xf32, #tpu.memory_space<vmem>>
    %173 = tpu.memref_slice %arg5[%c0_i32_86] : memref<2x!tpu.dma_semaphore, #tpu.memory_space<semaphore_mem>> -> memref<1x!tpu.dma_semaphore, #tpu.memory_space<semaphore_mem>>
    %174 = tpu.memref_squeeze %173 : memref<1x!tpu.dma_semaphore, #tpu.memory_space<semaphore_mem>> -> memref<!tpu.dma_semaphore, #tpu.memory_space<semaphore_mem>>
    tpu.wait_dma2 semaphore(%174 : memref<!tpu.dma_semaphore, #tpu.memory_space<semaphore_mem>>) src(%170 : memref<32xf32, #tpu.memory_space<any>>) dst(%172 : memref<32xf32, #tpu.memory_space<vmem>>)
    %c0_i32_89 = arith.constant 0 : i32
    %c5_i32_90 = arith.constant 5 : i32
    %c0_i32_91 = arith.constant 0 : i32
    %c0_i32_92 = arith.constant 0 : i32
    %175 = tpu.memref_slice %arg2[%c0_i32_89, %c0_i32_92] : memref<64x32xf32, #tpu.memory_space<any>> -> memref<1x32xf32, #tpu.memory_space<any>>
    %176 = tpu.memref_squeeze %175 : memref<1x32xf32, #tpu.memory_space<any>> -> memref<32xf32, #tpu.memory_space<any>>
    %c0_i32_93 = arith.constant 0 : i32
    %177 = tpu.memref_slice %arg4[%c5_i32_90, %c0_i32_93] : memref<16x32xf32, #tpu.memory_space<vmem>> -> memref<1x32xf32, #tpu.memory_space<vmem>>
    %178 = tpu.memref_squeeze %177 : memref<1x32xf32, #tpu.memory_space<vmem>> -> memref<32xf32, #tpu.memory_space<vmem>>
    %179 = tpu.memref_slice %arg5[%c0_i32_91] : memref<2x!tpu.dma_semaphore, #tpu.memory_space<semaphore_mem>> -> memref<1x!tpu.dma_semaphore, #tpu.memory_space<semaphore_mem>>
    %180 = tpu.memref_squeeze %179 : memref<1x!tpu.dma_semaphore, #tpu.memory_space<semaphore_mem>> -> memref<!tpu.dma_semaphore, #tpu.memory_space<semaphore_mem>>
    tpu.wait_dma2 semaphore(%180 : memref<!tpu.dma_semaphore, #tpu.memory_space<semaphore_mem>>) src(%176 : memref<32xf32, #tpu.memory_space<any>>) dst(%178 : memref<32xf32, #tpu.memory_space<vmem>>)
    %c0_i32_94 = arith.constant 0 : i32
    %c6_i32_95 = arith.constant 6 : i32
    %c0_i32_96 = arith.constant 0 : i32
    %c0_i32_97 = arith.constant 0 : i32
    %181 = tpu.memref_slice %arg2[%c0_i32_94, %c0_i32_97] : memref<64x32xf32, #tpu.memory_space<any>> -> memref<1x32xf32, #tpu.memory_space<any>>
    %182 = tpu.memref_squeeze %181 : memref<1x32xf32, #tpu.memory_space<any>> -> memref<32xf32, #tpu.memory_space<any>>
    %c0_i32_98 = arith.constant 0 : i32
    %183 = tpu.memref_slice %arg4[%c6_i32_95, %c0_i32_98] : memref<16x32xf32, #tpu.memory_space<vmem>> -> memref<1x32xf32, #tpu.memory_space<vmem>>
    %184 = tpu.memref_squeeze %183 : memref<1x32xf32, #tpu.memory_space<vmem>> -> memref<32xf32, #tpu.memory_space<vmem>>
    %185 = tpu.memref_slice %arg5[%c0_i32_96] : memref<2x!tpu.dma_semaphore, #tpu.memory_space<semaphore_mem>> -> memref<1x!tpu.dma_semaphore, #tpu.memory_space<semaphore_mem>>
    %186 = tpu.memref_squeeze %185 : memref<1x!tpu.dma_semaphore, #tpu.memory_space<semaphore_mem>> -> memref<!tpu.dma_semaphore, #tpu.memory_space<semaphore_mem>>
    tpu.wait_dma2 semaphore(%186 : memref<!tpu.dma_semaphore, #tpu.memory_space<semaphore_mem>>) src(%182 : memref<32xf32, #tpu.memory_space<any>>) dst(%184 : memref<32xf32, #tpu.memory_space<vmem>>)
    %c0_i32_99 = arith.constant 0 : i32
    %c7_i32_100 = arith.constant 7 : i32
    %c0_i32_101 = arith.constant 0 : i32
    %c0_i32_102 = arith.constant 0 : i32
    %187 = tpu.memref_slice %arg2[%c0_i32_99, %c0_i32_102] : memref<64x32xf32, #tpu.memory_space<any>> -> memref<1x32xf32, #tpu.memory_space<any>>
    %188 = tpu.memref_squeeze %187 : memref<1x32xf32, #tpu.memory_space<any>> -> memref<32xf32, #tpu.memory_space<any>>
    %c0_i32_103 = arith.constant 0 : i32
    %189 = tpu.memref_slice %arg4[%c7_i32_100, %c0_i32_103] : memref<16x32xf32, #tpu.memory_space<vmem>> -> memref<1x32xf32, #tpu.memory_space<vmem>>
    %190 = tpu.memref_squeeze %189 : memref<1x32xf32, #tpu.memory_space<vmem>> -> memref<32xf32, #tpu.memory_space<vmem>>
    %191 = tpu.memref_slice %arg5[%c0_i32_101] : memref<2x!tpu.dma_semaphore, #tpu.memory_space<semaphore_mem>> -> memref<1x!tpu.dma_semaphore, #tpu.memory_space<semaphore_mem>>
    %192 = tpu.memref_squeeze %191 : memref<1x!tpu.dma_semaphore, #tpu.memory_space<semaphore_mem>> -> memref<!tpu.dma_semaphore, #tpu.memory_space<semaphore_mem>>
    tpu.wait_dma2 semaphore(%192 : memref<!tpu.dma_semaphore, #tpu.memory_space<semaphore_mem>>) src(%188 : memref<32xf32, #tpu.memory_space<any>>) dst(%190 : memref<32xf32, #tpu.memory_space<vmem>>)
    %c0 = arith.constant 0 : index
    %c0_104 = arith.constant 0 : index
    %193 = vector.load %arg4[%c0, %c0_104] : memref<16x32xf32, #tpu.memory_space<vmem>>, vector<8x32xf32>
    %cst = arith.constant 5.65685415 : f32
    %194 = vector.broadcast %cst : f32 to vector<8x32xf32>
    %195 = arith.mulf %193, %194 : vector<8x32xf32>
    %c0_105 = arith.constant 0 : index
    %c0_106 = arith.constant 0 : index
    %196 = vector.load %arg3[%c0_105, %c0_106] : memref<16x32xf32, #tpu.memory_space<vmem>>, vector<8x32xf32>
    tpu.vector_store %arg3[%c0_105, %c0_106], %195 {strides = array<i32>} : memref<16x32xf32, #tpu.memory_space<vmem>>, vector<8x32xf32>,
    %c0_i32_107 = arith.constant 0 : i32
    %c8_i32_108 = arith.constant 8 : i32
    %c1_i32_109 = arith.constant 1 : i32
    %c0_i32_110 = arith.constant 0 : i32
    %197 = tpu.memref_slice %arg2[%c0_i32_107, %c0_i32_110] : memref<64x32xf32, #tpu.memory_space<any>> -> memref<1x32xf32, #tpu.memory_space<any>>
    %198 = tpu.memref_squeeze %197 : memref<1x32xf32, #tpu.memory_space<any>> -> memref<32xf32, #tpu.memory_space<any>>
    %c0_i32_111 = arith.constant 0 : i32
    %199 = tpu.memref_slice %arg4[%c8_i32_108, %c0_i32_111] : memref<16x32xf32, #tpu.memory_space<vmem>> -> memref<1x32xf32, #tpu.memory_space<vmem>>
    %200 = tpu.memref_squeeze %199 : memref<1x32xf32, #tpu.memory_space<vmem>> -> memref<32xf32, #tpu.memory_space<vmem>>
    %201 = tpu.memref_slice %arg5[%c1_i32_109] : memref<2x!tpu.dma_semaphore, #tpu.memory_space<semaphore_mem>> -> memref<1x!tpu.dma_semaphore, #tpu.memory_space<semaphore_mem>>
    %202 = tpu.memref_squeeze %201 : memref<1x!tpu.dma_semaphore, #tpu.memory_space<semaphore_mem>> -> memref<!tpu.dma_semaphore, #tpu.memory_space<semaphore_mem>>
    tpu.wait_dma2 semaphore(%202 : memref<!tpu.dma_semaphore, #tpu.memory_space<semaphore_mem>>) src(%198 : memref<32xf32, #tpu.memory_space<any>>) dst(%200 : memref<32xf32, #tpu.memory_space<vmem>>)
    %c0_i32_112 = arith.constant 0 : i32
    %c9_i32_113 = arith.constant 9 : i32
    %c1_i32_114 = arith.constant 1 : i32
    %c0_i32_115 = arith.constant 0 : i32
    %203 = tpu.memref_slice %arg2[%c0_i32_112, %c0_i32_115] : memref<64x32xf32, #tpu.memory_space<any>> -> memref<1x32xf32, #tpu.memory_space<any>>
    %204 = tpu.memref_squeeze %203 : memref<1x32xf32, #tpu.memory_space<any>> -> memref<32xf32, #tpu.memory_space<any>>
    %c0_i32_116 = arith.constant 0 : i32
    %205 = tpu.memref_slice %arg4[%c9_i32_113, %c0_i32_116] : memref<16x32xf32, #tpu.memory_space<vmem>> -> memref<1x32xf32, #tpu.memory_space<vmem>>
    %206 = tpu.memref_squeeze %205 : memref<1x32xf32, #tpu.memory_space<vmem>> -> memref<32xf32, #tpu.memory_space<vmem>>
    %207 = tpu.memref_slice %arg5[%c1_i32_114] : memref<2x!tpu.dma_semaphore, #tpu.memory_space<semaphore_mem>> -> memref<1x!tpu.dma_semaphore, #tpu.memory_space<semaphore_mem>>
    %208 = tpu.memref_squeeze %207 : memref<1x!tpu.dma_semaphore, #tpu.memory_space<semaphore_mem>> -> memref<!tpu.dma_semaphore, #tpu.memory_space<semaphore_mem>>
    tpu.wait_dma2 semaphore(%208 : memref<!tpu.dma_semaphore, #tpu.memory_space<semaphore_mem>>) src(%204 : memref<32xf32, #tpu.memory_space<any>>) dst(%206 : memref<32xf32, #tpu.memory_space<vmem>>)
    %c0_i32_117 = arith.constant 0 : i32
    %c10_i32_118 = arith.constant 10 : i32
    %c1_i32_119 = arith.constant 1 : i32
    %c0_i32_120 = arith.constant 0 : i32
    %209 = tpu.memref_slice %arg2[%c0_i32_117, %c0_i32_120] : memref<64x32xf32, #tpu.memory_space<any>> -> memref<1x32xf32, #tpu.memory_space<any>>
    %210 = tpu.memref_squeeze %209 : memref<1x32xf32, #tpu.memory_space<any>> -> memref<32xf32, #tpu.memory_space<any>>
    %c0_i32_121 = arith.constant 0 : i32
    %211 = tpu.memref_slice %arg4[%c10_i32_118, %c0_i32_121] : memref<16x32xf32, #tpu.memory_space<vmem>> -> memref<1x32xf32, #tpu.memory_space<vmem>>
    %212 = tpu.memref_squeeze %211 : memref<1x32xf32, #tpu.memory_space<vmem>> -> memref<32xf32, #tpu.memory_space<vmem>>
    %213 = tpu.memref_slice %arg5[%c1_i32_119] : memref<2x!tpu.dma_semaphore, #tpu.memory_space<semaphore_mem>> -> memref<1x!tpu.dma_semaphore, #tpu.memory_space<semaphore_mem>>
    %214 = tpu.memref_squeeze %213 : memref<1x!tpu.dma_semaphore, #tpu.memory_space<semaphore_mem>> -> memref<!tpu.dma_semaphore, #tpu.memory_space<semaphore_mem>>
    tpu.wait_dma2 semaphore(%214 : memref<!tpu.dma_semaphore, #tpu.memory_space<semaphore_mem>>) src(%210 : memref<32xf32, #tpu.memory_space<any>>) dst(%212 : memref<32xf32, #tpu.memory_space<vmem>>)
    %c0_i32_122 = arith.constant 0 : i32
    %c11_i32_123 = arith.constant 11 : i32
    %c1_i32_124 = arith.constant 1 : i32
    %c0_i32_125 = arith.constant 0 : i32
    %215 = tpu.memref_slice %arg2[%c0_i32_122, %c0_i32_125] : memref<64x32xf32, #tpu.memory_space<any>> -> memref<1x32xf32, #tpu.memory_space<any>>
    %216 = tpu.memref_squeeze %215 : memref<1x32xf32, #tpu.memory_space<any>> -> memref<32xf32, #tpu.memory_space<any>>
    %c0_i32_126 = arith.constant 0 : i32
    %217 = tpu.memref_slice %arg4[%c11_i32_123, %c0_i32_126] : memref<16x32xf32, #tpu.memory_space<vmem>> -> memref<1x32xf32, #tpu.memory_space<vmem>>
    %218 = tpu.memref_squeeze %217 : memref<1x32xf32, #tpu.memory_space<vmem>> -> memref<32xf32, #tpu.memory_space<vmem>>
    %219 = tpu.memref_slice %arg5[%c1_i32_124] : memref<2x!tpu.dma_semaphore, #tpu.memory_space<semaphore_mem>> -> memref<1x!tpu.dma_semaphore, #tpu.memory_space<semaphore_mem>>
    %220 = tpu.memref_squeeze %219 : memref<1x!tpu.dma_semaphore, #tpu.memory_space<semaphore_mem>> -> memref<!tpu.dma_semaphore, #tpu.memory_space<semaphore_mem>>
    tpu.wait_dma2 semaphore(%220 : memref<!tpu.dma_semaphore, #tpu.memory_space<semaphore_mem>>) src(%216 : memref<32xf32, #tpu.memory_space<any>>) dst(%218 : memref<32xf32, #tpu.memory_space<vmem>>)
    %c0_i32_127 = arith.constant 0 : i32
    %c12_i32_128 = arith.constant 12 : i32
    %c1_i32_129 = arith.constant 1 : i32
    %c0_i32_130 = arith.constant 0 : i32
    %221 = tpu.memref_slice %arg2[%c0_i32_127, %c0_i32_130] : memref<64x32xf32, #tpu.memory_space<any>> -> memref<1x32xf32, #tpu.memory_space<any>>
    %222 = tpu.memref_squeeze %221 : memref<1x32xf32, #tpu.memory_space<any>> -> memref<32xf32, #tpu.memory_space<any>>
    %c0_i32_131 = arith.constant 0 : i32
    %223 = tpu.memref_slice %arg4[%c12_i32_128, %c0_i32_131] : memref<16x32xf32, #tpu.memory_space<vmem>> -> memref<1x32xf32, #tpu.memory_space<vmem>>
    %224 = tpu.memref_squeeze %223 : memref<1x32xf32, #tpu.memory_space<vmem>> -> memref<32xf32, #tpu.memory_space<vmem>>
    %225 = tpu.memref_slice %arg5[%c1_i32_129] : memref<2x!tpu.dma_semaphore, #tpu.memory_space<semaphore_mem>> -> memref<1x!tpu.dma_semaphore, #tpu.memory_space<semaphore_mem>>
    %226 = tpu.memref_squeeze %225 : memref<1x!tpu.dma_semaphore, #tpu.memory_space<semaphore_mem>> -> memref<!tpu.dma_semaphore, #tpu.memory_space<semaphore_mem>>
    tpu.wait_dma2 semaphore(%226 : memref<!tpu.dma_semaphore, #tpu.memory_space<semaphore_mem>>) src(%222 : memref<32xf32, #tpu.memory_space<any>>) dst(%224 : memref<32xf32, #tpu.memory_space<vmem>>)
    %c0_i32_132 = arith.constant 0 : i32
    %c13_i32_133 = arith.constant 13 : i32
    %c1_i32_134 = arith.constant 1 : i32
    %c0_i32_135 = arith.constant 0 : i32
    %227 = tpu.memref_slice %arg2[%c0_i32_132, %c0_i32_135] : memref<64x32xf32, #tpu.memory_space<any>> -> memref<1x32xf32, #tpu.memory_space<any>>
    %228 = tpu.memref_squeeze %227 : memref<1x32xf32, #tpu.memory_space<any>> -> memref<32xf32, #tpu.memory_space<any>>
    %c0_i32_136 = arith.constant 0 : i32
    %229 = tpu.memref_slice %arg4[%c13_i32_133, %c0_i32_136] : memref<16x32xf32, #tpu.memory_space<vmem>> -> memref<1x32xf32, #tpu.memory_space<vmem>>
    %230 = tpu.memref_squeeze %229 : memref<1x32xf32, #tpu.memory_space<vmem>> -> memref<32xf32, #tpu.memory_space<vmem>>
    %231 = tpu.memref_slice %arg5[%c1_i32_134] : memref<2x!tpu.dma_semaphore, #tpu.memory_space<semaphore_mem>> -> memref<1x!tpu.dma_semaphore, #tpu.memory_space<semaphore_mem>>
    %232 = tpu.memref_squeeze %231 : memref<1x!tpu.dma_semaphore, #tpu.memory_space<semaphore_mem>> -> memref<!tpu.dma_semaphore, #tpu.memory_space<semaphore_mem>>
    tpu.wait_dma2 semaphore(%232 : memref<!tpu.dma_semaphore, #tpu.memory_space<semaphore_mem>>) src(%228 : memref<32xf32, #tpu.memory_space<any>>) dst(%230 : memref<32xf32, #tpu.memory_space<vmem>>)
    %c0_i32_137 = arith.constant 0 : i32
    %c14_i32_138 = arith.constant 14 : i32
    %c1_i32_139 = arith.constant 1 : i32
    %c0_i32_140 = arith.constant 0 : i32
    %233 = tpu.memref_slice %arg2[%c0_i32_137, %c0_i32_140] : memref<64x32xf32, #tpu.memory_space<any>> -> memref<1x32xf32, #tpu.memory_space<any>>
    %234 = tpu.memref_squeeze %233 : memref<1x32xf32, #tpu.memory_space<any>> -> memref<32xf32, #tpu.memory_space<any>>
    %c0_i32_141 = arith.constant 0 : i32
    %235 = tpu.memref_slice %arg4[%c14_i32_138, %c0_i32_141] : memref<16x32xf32, #tpu.memory_space<vmem>> -> memref<1x32xf32, #tpu.memory_space<vmem>>
    %236 = tpu.memref_squeeze %235 : memref<1x32xf32, #tpu.memory_space<vmem>> -> memref<32xf32, #tpu.memory_space<vmem>>
    %237 = tpu.memref_slice %arg5[%c1_i32_139] : memref<2x!tpu.dma_semaphore, #tpu.memory_space<semaphore_mem>> -> memref<1x!tpu.dma_semaphore, #tpu.memory_space<semaphore_mem>>
    %238 = tpu.memref_squeeze %237 : memref<1x!tpu.dma_semaphore, #tpu.memory_space<semaphore_mem>> -> memref<!tpu.dma_semaphore, #tpu.memory_space<semaphore_mem>>
    tpu.wait_dma2 semaphore(%238 : memref<!tpu.dma_semaphore, #tpu.memory_space<semaphore_mem>>) src(%234 : memref<32xf32, #tpu.memory_space<any>>) dst(%236 : memref<32xf32, #tpu.memory_space<vmem>>)
    %c0_i32_142 = arith.constant 0 : i32
    %c15_i32_143 = arith.constant 15 : i32
    %c1_i32_144 = arith.constant 1 : i32
    %c0_i32_145 = arith.constant 0 : i32
    %239 = tpu.memref_slice %arg2[%c0_i32_142, %c0_i32_145] : memref<64x32xf32, #tpu.memory_space<any>> -> memref<1x32xf32, #tpu.memory_space<any>>
    %240 = tpu.memref_squeeze %239 : memref<1x32xf32, #tpu.memory_space<any>> -> memref<32xf32, #tpu.memory_space<any>>
    %c0_i32_146 = arith.constant 0 : i32
    %241 = tpu.memref_slice %arg4[%c15_i32_143, %c0_i32_146] : memref<16x32xf32, #tpu.memory_space<vmem>> -> memref<1x32xf32, #tpu.memory_space<vmem>>
    %242 = tpu.memref_squeeze %241 : memref<1x32xf32, #tpu.memory_space<vmem>> -> memref<32xf32, #tpu.memory_space<vmem>>
    %243 = tpu.memref_slice %arg5[%c1_i32_144] : memref<2x!tpu.dma_semaphore, #tpu.memory_space<semaphore_mem>> -> memref<1x!tpu.dma_semaphore, #tpu.memory_space<semaphore_mem>>
    %244 = tpu.memref_squeeze %243 : memref<1x!tpu.dma_semaphore, #tpu.memory_space<semaphore_mem>> -> memref<!tpu.dma_semaphore, #tpu.memory_space<semaphore_mem>>
    tpu.wait_dma2 semaphore(%244 : memref<!tpu.dma_semaphore, #tpu.memory_space<semaphore_mem>>) src(%240 : memref<32xf32, #tpu.memory_space<any>>) dst(%242 : memref<32xf32, #tpu.memory_space<vmem>>)
    %c8 = arith.constant 8 : index
    %c0_147 = arith.constant 0 : index
    %245 = vector.load %arg4[%c8, %c0_147] : memref<16x32xf32, #tpu.memory_space<vmem>>, vector<8x32xf32>
    %cst_148 = arith.constant 5.65685415 : f32
    %246 = vector.broadcast %cst_148 : f32 to vector<8x32xf32>
    %247 = arith.mulf %245, %246 : vector<8x32xf32>
    %c8_149 = arith.constant 8 : index
    %c0_150 = arith.constant 0 : index
    %248 = vector.load %arg3[%c8_149, %c0_150] : memref<16x32xf32, #tpu.memory_space<vmem>>, vector<8x32xf32>
    tpu.vector_store %arg3[%c8_149, %c0_150], %247 {strides = array<i32>} : memref<16x32xf32, #tpu.memory_space<vmem>>, vector<8x32xf32>,
    return
  }
  func.func @transform_1(%arg0: i32, %arg1: memref<16xi32, #tpu.memory_space<smem>>) -> (i32, i32) {
    %c0_i32 = arith.constant 0 : i32
    %c0_i32_0 = arith.constant 0 : i32
    return %arg0, %c0_i32 : i32, i32
  }
}

</mosaic_0001>

<llo_original>
// kernel: tpu_custom_call.1
$region0: #{tpu_custom_call.1}
  #allocation0 [shape = 'u32[]', space=smem, size = 0x4, offset = 0x4, fixed_abs, tag = 'smem constant byte address 0x4 - core index']
  #allocation1 [shape = 'u32[144,128]{1,0:T(1,128)}', space=vmem, size = 0x12000, scoped, tag = 'internal scratch']
  #allocation2 [shape = 'f32[16,32]{1,0:T(8,128)}', space=vmem, size = 0x2000, scoped, tag = 'scratch operand']
  #allocation3 [shape = 's32[2]{0}', space=sflag, size = 0x8, scoped, tag = 'scratch operand']
  #allocation4 [shape = 's32[1]{0}', space=sflag, size = 0x4, scoped, tag = 'scoped memory for tpu_custom_call.1']
  #allocation5 [shape = 'u8[512]{0}', space=smem, size = 0x200, scoped, tag = 'prefetched SMEM operand 0']
  #allocation8 [shape = 's32[]', space=sflag, size = 0x4, offset = 0, fixed_abs, tag = 'sflag constant byte address 0x0 - dummy sync flag']
  #allocation9 [shape = 's32[]', space=sflag, size = 0x4, offset = 0, fixed_abs, tag = 'sflag constant byte address 0x0 - dummy sync flag']
  #allocation10 [shape = 's32[]', space=sflag, size = 0x4, offset = 0, fixed_abs, tag = 'sflag constant byte address 0x0 - dummy sync flag']
  #allocation11 [shape = 's32[]', space=sflag, size = 0x4, offset = 0, fixed_abs, tag = 'sflag constant byte address 0x0 - dummy sync flag']
  #allocation12 [shape = 's32[]', space=sflag, size = 0x4, offset = 0, fixed_abs, tag = 'sflag constant byte address 0x0 - dummy sync flag']
  #allocation13 [shape = 's32[]', space=sflag, size = 0x4, offset = 0, fixed_abs, tag = 'sflag constant byte address 0x0 - dummy sync flag']
  #allocation14 [shape = 's32[]', space=sflag, size = 0x4, offset = 0, fixed_abs, tag = 'sflag constant byte address 0x0 - dummy sync flag']
  #allocation15 [shape = 's32[]', space=sflag, size = 0x4, offset = 0, fixed_abs, tag = 'sflag constant byte address 0x0 - dummy sync flag']
  #allocation16 [shape = 's32[]', space=sflag, size = 0x4, offset = 0, fixed_abs, tag = 'sflag constant byte address 0x0 - dummy sync flag']
  #allocation17 [shape = 's32[]', space=sflag, size = 0x4, offset = 0, fixed_abs, tag = 'sflag constant byte address 0x0 - dummy sync flag']
  #allocation18 [shape = 's32[]', space=sflag, size = 0x4, offset = 0, fixed_abs, tag = 'sflag constant byte address 0x0 - dummy sync flag']
  #allocation19 [shape = 's32[]', space=sflag, size = 0x4, offset = 0, fixed_abs, tag = 'sflag constant byte address 0x0 - dummy sync flag']
  #allocation20 [shape = 's32[]', space=sflag, size = 0x4, offset = 0, fixed_abs, tag = 'sflag constant byte address 0x0 - dummy sync flag']
  #allocation21 [shape = 's32[]', space=sflag, size = 0x4, offset = 0, fixed_abs, tag = 'sflag constant byte address 0x0 - dummy sync flag']
  #allocation22 [shape = 's32[]', space=sflag, size = 0x4, offset = 0, fixed_abs, tag = 'sflag constant byte address 0x0 - dummy sync flag']
  #allocation23 [shape = 's32[]', space=sflag, size = 0x4, offset = 0, fixed_abs, tag = 'sflag constant byte address 0x0 - dummy sync flag']
  %s0 = inlined_call_operand.vmem [shape: s32[16], index: 0, kind: input, shape index: {}]
  %s1 = inlined_call_operand.vmem [shape: f32[64,32], index: 1, kind: input, shape index: {}]
  %s2 = inlined_call_operand.hbm [shape: f32[16,32], index: 2, kind: output, shape index: {}]
  %s3 = sld [smem:[#allocation0]]
  $region490: #{tpu_custom_call.1} parent=0
    _
  %s5 = ssub.s32 1, %s3
  %s6 = scalar_select 0, %s5, %s3
  %s7 = sshll.u32 %s0, 4
  %s8 = int_to_ptr.vmem [resolvable:$true] %s7
  %10 = dma.vmem_to_smem %s8, 16, [#allocation5], [#allocation4]
  %11 = dma.done [#allocation4], 16
  %12 = sfence
  $region1: #{tpu_custom_call.1} parent=0
    #allocation6 [shape = 'u8[8192]{0}', space=vmem, size = 0x2000, scoped, tag = 'output window, operand 0, single buffered']
    #allocation7 [shape = 's32[1]{0}', space=sflag, size = 0x4, scoped, tag = 'scoped memory for tpu_custom_call.1']
    %13 = vsyncpa [#allocation7], 0
    %s14 = smul.u32 0, 16
    %s15 = sld [smem:[#allocation5 + %s14]]
    %s16 = scalar_lea.vmem %s1, %s15
    %p18 = scmp.lt.u32.totalorder 1, 8
    %p19 = pneg %p18
    // Predicated region
    $region2: #{tpu_custom_call.1} parent=1 // pred_check
      _
    $region3: #{tpu_custom_call.1} parent=1 // pred_check_branch
      %21 = sbr.rel (%p18) target = $region5
    $region4: #{tpu_custom_call.1} parent=1 // pred_region
      %s36 = sand.u32 1, 7
      %p37 = scmp.eq.s32.totalorder %s36, 0
      %p38 = pneg %p37
      // Predicated region
      $region17: #{tpu_custom_call.1} parent=4 // pred_check
        _
      $region18: #{tpu_custom_call.1} parent=4 // pred_check_branch
        %40 = sbr.rel (%p37) target = $region20
      $region19: #{tpu_custom_call.1} parent=4 // pred_region
        %s41 = sand.u32 1, 7
        %s42 = ssub.s32 1, %s41
        %s43 = scalar_lea.vmem %s16, %s42
        %s44 = ssub.s32 1, %s41
        %s45 = scalar_lea.vmem [#allocation2], %s44
        %s46 = sshllo.u32 0, %s41
        loop: start=0, step=1, limit=1
        $region21: #{tpu_custom_call.1} parent=19 // loop_pre_header
          _
        $region22: #{tpu_custom_call.1} parent=19 // loop_header
          %s48 = sphi 0, %s52
          %p49 = scmp.ge.s32.totalorder %s48, 1
          %s53 = sphi %s43, %s43
          %s54 = sphi %s45, %s45
        $region23: #{tpu_custom_call.1} parent=19 // loop_header_branch
          %51 = sbr.rel (%p49) target = $region27
        $region24: #{tpu_custom_call.1} parent=19 // loop_body
          %v55 = vld [vmem:[%s53] sm:%s46]
          %56 = vst [vmem:[%s54] sm:%s46] %v55
        $region25: #{tpu_custom_call.1} parent=19 // loop_footer
          %s52 = sadd.s32 1, %s48
        $region26: #{tpu_custom_call.1} parent=19 // loop_footer_branch
          %47 = sbr.rel target = $region22
        $region27: #{tpu_custom_call.1} parent=19 // loop_exit
          _
      $region20: #{tpu_custom_call.1} parent=4 // pred_fallthru
        _
    $region5: #{tpu_custom_call.1} parent=1 // pred_fallthru
      _
    // Predicated region
    $region6: #{tpu_custom_call.1} parent=1 // pred_check
      %p22 = pneg %p18
    $region7: #{tpu_custom_call.1} parent=1 // pred_check_branch
      %24 = sbr.rel (%p22) target = $region9
    $region8: #{tpu_custom_call.1} parent=1 // pred_region
      %s25 = sshllo.u32 0, 1
      loop: start=0, step=1, limit=1
      $region10: #{tpu_custom_call.1} parent=8 // loop_pre_header
        _
      $region11: #{tpu_custom_call.1} parent=8 // loop_header
        %s27 = sphi 0, %s31
        %p28 = scmp.ge.s32.totalorder %s27, 1
        %s32 = sphi %s16, %s16
        %s33 = sphi [#allocation2], [#allocation2]
      $region12: #{tpu_custom_call.1} parent=8 // loop_header_branch
        %30 = sbr.rel (%p28) target = $region16
      $region13: #{tpu_custom_call.1} parent=8 // loop_body
        %v34 = vld [vmem:[%s32] sm:%s25]
        %35 = vst [vmem:[%s33] sm:%s25] %v34
      $region14: #{tpu_custom_call.1} parent=8 // loop_footer
        %s31 = sadd.s32 1, %s27
      $region15: #{tpu_custom_call.1} parent=8 // loop_footer_branch
        %26 = sbr.rel target = $region11
      $region16: #{tpu_custom_call.1} parent=8 // loop_exit
        _
    $region9: #{tpu_custom_call.1} parent=1 // pred_fallthru
      _
    // Predicated region
    $region28: #{tpu_custom_call.1} parent=1 // pred_check
      _
    $region29: #{tpu_custom_call.1} parent=1 // pred_check_branch
      %59 = sbr.rel (0) target = $region31
    $region30: #{tpu_custom_call.1} parent=1 // pred_region
      %60 = vsyncadd [#allocation3], 16
    $region31: #{tpu_custom_call.1} parent=1 // pred_fallthru
      _
    %s61 = sadd.s32 %s14, 1
    %s62 = sld [smem:[#allocation5 + %s61]]
    %s63 = scalar_lea.vmem %s1, %s62
    %s64 = scalar_lea.vmem [#allocation2], 1
    %p66 = scmp.lt.u32.totalorder 1, 8
    %p67 = pneg %p66
    // Predicated region
    $region32: #{tpu_custom_call.1} parent=1 // pred_check
      _
    $region33: #{tpu_custom_call.1} parent=1 // pred_check_branch
      %69 = sbr.rel (%p66) target = $region35
    $region34: #{tpu_custom_call.1} parent=1 // pred_region
      %s84 = sand.u32 1, 7
      %p85 = scmp.eq.s32.totalorder %s84, 0
      %p86 = pneg %p85
      // Predicated region
      $region47: #{tpu_custom_call.1} parent=34 // pred_check
        _
      $region48: #{tpu_custom_call.1} parent=34 // pred_check_branch
        %88 = sbr.rel (%p85) target = $region50
      $region49: #{tpu_custom_call.1} parent=34 // pred_region
        %s89 = sand.u32 1, 7
        %s90 = ssub.s32 1, %s89
        %s91 = scalar_lea.vmem %s63, %s90
        %s92 = ssub.s32 1, %s89
        %s93 = scalar_lea.vmem %s64, %s92 [#allocation2]
        %s94 = sshllo.u32 0, %s89
        loop: start=0, step=1, limit=1
        $region51: #{tpu_custom_call.1} parent=49 // loop_pre_header
          _
        $region52: #{tpu_custom_call.1} parent=49 // loop_header
          %s96 = sphi 0, %s100
          %p97 = scmp.ge.s32.totalorder %s96, 1
          %s101 = sphi %s91, %s91
          %s102 = sphi %s93, %s93
        $region53: #{tpu_custom_call.1} parent=49 // loop_header_branch
          %99 = sbr.rel (%p97) target = $region57
        $region54: #{tpu_custom_call.1} parent=49 // loop_body
          %v103 = vld [vmem:[%s101] sm:%s94]
          %104 = vst [vmem:[%s102] sm:%s94] %v103
        $region55: #{tpu_custom_call.1} parent=49 // loop_footer
          %s100 = sadd.s32 1, %s96
        $region56: #{tpu_custom_call.1} parent=49 // loop_footer_branch
          %95 = sbr.rel target = $region52
        $region57: #{tpu_custom_call.1} parent=49 // loop_exit
          _
      $region50: #{tpu_custom_call.1} parent=34 // pred_fallthru
        _
    $region35: #{tpu_custom_call.1} parent=1 // pred_fallthru
      _
    // Predicated region
    $region36: #{tpu_custom_call.1} parent=1 // pred_check
      %p70 = pneg %p66
    $region37: #{tpu_custom_call.1} parent=1 // pred_check_branch
      %72 = sbr.rel (%p70) target = $region39
    $region38: #{tpu_custom_call.1} parent=1 // pred_region
      %s73 = sshllo.u32 0, 1
      loop: start=0, step=1, limit=1
      $region40: #{tpu_custom_call.1} parent=38 // loop_pre_header
        _
      $region41: #{tpu_custom_call.1} parent=38 // loop_header
        %s75 = sphi 0, %s79
        %p76 = scmp.ge.s32.totalorder %s75, 1
        %s80 = sphi %s63, %s63
        %s81 = sphi %s64, %s64
      $region42: #{tpu_custom_call.1} parent=38 // loop_header_branch
        %78 = sbr.rel (%p76) target = $region46
      $region43: #{tpu_custom_call.1} parent=38 // loop_body
        %v82 = vld [vmem:[%s80] sm:%s73]
        %83 = vst [vmem:[%s81] sm:%s73] %v82
      $region44: #{tpu_custom_call.1} parent=38 // loop_footer
        %s79 = sadd.s32 1, %s75
      $region45: #{tpu_custom_call.1} parent=38 // loop_footer_branch
        %74 = sbr.rel target = $region41
      $region46: #{tpu_custom_call.1} parent=38 // loop_exit
        _
    $region39: #{tpu_custom_call.1} parent=1 // pred_fallthru
      _
    // Predicated region
    $region58: #{tpu_custom_call.1} parent=1 // pred_check
      _
    $region59: #{tpu_custom_call.1} parent=1 // pred_check_branch
      %107 = sbr.rel (0) target = $region61
    $region60: #{tpu_custom_call.1} parent=1 // pred_region
      %108 = vsyncadd [#allocation3], 16
    $region61: #{tpu_custom_call.1} parent=1 // pred_fallthru
      _
    %s109 = sadd.s32 %s14, 2
    %s110 = sld [smem:[#allocation5 + %s109]]
    %s111 = scalar_lea.vmem %s1, %s110
    %s112 = scalar_lea.vmem [#allocation2], 2
    %p114 = scmp.lt.u32.totalorder 1, 8
    %p115 = pneg %p114
    // Predicated region
    $region62: #{tpu_custom_call.1} parent=1 // pred_check
      _
    $region63: #{tpu_custom_call.1} parent=1 // pred_check_branch
      %117 = sbr.rel (%p114) target = $region65
    $region64: #{tpu_custom_call.1} parent=1 // pred_region
      %s132 = sand.u32 1, 7
      %p133 = scmp.eq.s32.totalorder %s132, 0
      %p134 = pneg %p133
      // Predicated region
      $region77: #{tpu_custom_call.1} parent=64 // pred_check
        _
      $region78: #{tpu_custom_call.1} parent=64 // pred_check_branch
        %136 = sbr.rel (%p133) target = $region80
      $region79: #{tpu_custom_call.1} parent=64 // pred_region
        %s137 = sand.u32 1, 7
        %s138 = ssub.s32 1, %s137
        %s139 = scalar_lea.vmem %s111, %s138
        %s140 = ssub.s32 1, %s137
        %s141 = scalar_lea.vmem %s112, %s140 [#allocation2]
        %s142 = sshllo.u32 0, %s137
        loop: start=0, step=1, limit=1
        $region81: #{tpu_custom_call.1} parent=79 // loop_pre_header
          _
        $region82: #{tpu_custom_call.1} parent=79 // loop_header
          %s144 = sphi 0, %s148
          %p145 = scmp.ge.s32.totalorder %s144, 1
          %s149 = sphi %s139, %s139
          %s150 = sphi %s141, %s141
        $region83: #{tpu_custom_call.1} parent=79 // loop_header_branch
          %147 = sbr.rel (%p145) target = $region87
        $region84: #{tpu_custom_call.1} parent=79 // loop_body
          %v151 = vld [vmem:[%s149] sm:%s142]
          %152 = vst [vmem:[%s150] sm:%s142] %v151
        $region85: #{tpu_custom_call.1} parent=79 // loop_footer
          %s148 = sadd.s32 1, %s144
        $region86: #{tpu_custom_call.1} parent=79 // loop_footer_branch
          %143 = sbr.rel target = $region82
        $region87: #{tpu_custom_call.1} parent=79 // loop_exit
          _
      $region80: #{tpu_custom_call.1} parent=64 // pred_fallthru
        _
    $region65: #{tpu_custom_call.1} parent=1 // pred_fallthru
      _
    // Predicated region
    $region66: #{tpu_custom_call.1} parent=1 // pred_check
      %p118 = pneg %p114
    $region67: #{tpu_custom_call.1} parent=1 // pred_check_branch
      %120 = sbr.rel (%p118) target = $region69
    $region68: #{tpu_custom_call.1} parent=1 // pred_region
      %s121 = sshllo.u32 0, 1
      loop: start=0, step=1, limit=1
      $region70: #{tpu_custom_call.1} parent=68 // loop_pre_header
        _
      $region71: #{tpu_custom_call.1} parent=68 // loop_header
        %s123 = sphi 0, %s127
        %p124 = scmp.ge.s32.totalorder %s123, 1
        %s128 = sphi %s111, %s111
        %s129 = sphi %s112, %s112
      $region72: #{tpu_custom_call.1} parent=68 // loop_header_branch
        %126 = sbr.rel (%p124) target = $region76
      $region73: #{tpu_custom_call.1} parent=68 // loop_body
        %v130 = vld [vmem:[%s128] sm:%s121]
        %131 = vst [vmem:[%s129] sm:%s121] %v130
      $region74: #{tpu_custom_call.1} parent=68 // loop_footer
        %s127 = sadd.s32 1, %s123
      $region75: #{tpu_custom_call.1} parent=68 // loop_footer_branch
        %122 = sbr.rel target = $region71
      $region76: #{tpu_custom_call.1} parent=68 // loop_exit
        _
    $region69: #{tpu_custom_call.1} parent=1 // pred_fallthru
      _
    // Predicated region
    $region88: #{tpu_custom_call.1} parent=1 // pred_check
      _
    $region89: #{tpu_custom_call.1} parent=1 // pred_check_branch
      %155 = sbr.rel (0) target = $region91
    $region90: #{tpu_custom_call.1} parent=1 // pred_region
      %156 = vsyncadd [#allocation3], 16
    $region91: #{tpu_custom_call.1} parent=1 // pred_fallthru
      _
    %s157 = sadd.s32 %s14, 3
    %s158 = sld [smem:[#allocation5 + %s157]]
    %s159 = scalar_lea.vmem %s1, %s158
    %s160 = scalar_lea.vmem [#allocation2], 3
    %p162 = scmp.lt.u32.totalorder 1, 8
    %p163 = pneg %p162
    // Predicated region
    $region92: #{tpu_custom_call.1} parent=1 // pred_check
      _
    $region93: #{tpu_custom_call.1} parent=1 // pred_check_branch
      %165 = sbr.rel (%p162) target = $region95
    $region94: #{tpu_custom_call.1} parent=1 // pred_region
      %s180 = sand.u32 1, 7
      %p181 = scmp.eq.s32.totalorder %s180, 0
      %p182 = pneg %p181
      // Predicated region
      $region107: #{tpu_custom_call.1} parent=94 // pred_check
        _
      $region108: #{tpu_custom_call.1} parent=94 // pred_check_branch
        %184 = sbr.rel (%p181) target = $region110
      $region109: #{tpu_custom_call.1} parent=94 // pred_region
        %s185 = sand.u32 1, 7
        %s186 = ssub.s32 1, %s185
        %s187 = scalar_lea.vmem %s159, %s186
        %s188 = ssub.s32 1, %s185
        %s189 = scalar_lea.vmem %s160, %s188 [#allocation2]
        %s190 = sshllo.u32 0, %s185
        loop: start=0, step=1, limit=1
        $region111: #{tpu_custom_call.1} parent=109 // loop_pre_header
          _
        $region112: #{tpu_custom_call.1} parent=109 // loop_header
          %s192 = sphi 0, %s196
          %p193 = scmp.ge.s32.totalorder %s192, 1
          %s197 = sphi %s187, %s187
          %s198 = sphi %s189, %s189
        $region113: #{tpu_custom_call.1} parent=109 // loop_header_branch
          %195 = sbr.rel (%p193) target = $region117
        $region114: #{tpu_custom_call.1} parent=109 // loop_body
          %v199 = vld [vmem:[%s197] sm:%s190]
          %200 = vst [vmem:[%s198] sm:%s190] %v199
        $region115: #{tpu_custom_call.1} parent=109 // loop_footer
          %s196 = sadd.s32 1, %s192
        $region116: #{tpu_custom_call.1} parent=109 // loop_footer_branch
          %191 = sbr.rel target = $region112
        $region117: #{tpu_custom_call.1} parent=109 // loop_exit
          _
      $region110: #{tpu_custom_call.1} parent=94 // pred_fallthru
        _
    $region95: #{tpu_custom_call.1} parent=1 // pred_fallthru
      _
    // Predicated region
    $region96: #{tpu_custom_call.1} parent=1 // pred_check
      %p166 = pneg %p162
    $region97: #{tpu_custom_call.1} parent=1 // pred_check_branch
      %168 = sbr.rel (%p166) target = $region99
    $region98: #{tpu_custom_call.1} parent=1 // pred_region
      %s169 = sshllo.u32 0, 1
      loop: start=0, step=1, limit=1
      $region100: #{tpu_custom_call.1} parent=98 // loop_pre_header
        _
      $region101: #{tpu_custom_call.1} parent=98 // loop_header
        %s171 = sphi 0, %s175
        %p172 = scmp.ge.s32.totalorder %s171, 1
        %s176 = sphi %s159, %s159
        %s177 = sphi %s160, %s160
      $region102: #{tpu_custom_call.1} parent=98 // loop_header_branch
        %174 = sbr.rel (%p172) target = $region106
      $region103: #{tpu_custom_call.1} parent=98 // loop_body
        %v178 = vld [vmem:[%s176] sm:%s169]
        %179 = vst [vmem:[%s177] sm:%s169] %v178
      $region104: #{tpu_custom_call.1} parent=98 // loop_footer
        %s175 = sadd.s32 1, %s171
      $region105: #{tpu_custom_call.1} parent=98 // loop_footer_branch
        %170 = sbr.rel target = $region101
      $region106: #{tpu_custom_call.1} parent=98 // loop_exit
        _
    $region99: #{tpu_custom_call.1} parent=1 // pred_fallthru
      _
    // Predicated region
    $region118: #{tpu_custom_call.1} parent=1 // pred_check
      _
    $region119: #{tpu_custom_call.1} parent=1 // pred_check_branch
      %203 = sbr.rel (0) target = $region121
    $region120: #{tpu_custom_call.1} parent=1 // pred_region
      %204 = vsyncadd [#allocation3], 16
    $region121: #{tpu_custom_call.1} parent=1 // pred_fallthru
      _
    %s205 = sadd.s32 %s14, 4
    %s206 = sld [smem:[#allocation5 + %s205]]
    %s207 = scalar_lea.vmem %s1, %s206
    %s208 = scalar_lea.vmem [#allocation2], 4
    %p210 = scmp.lt.u32.totalorder 1, 8
    %p211 = pneg %p210
    // Predicated region
    $region122: #{tpu_custom_call.1} parent=1 // pred_check
      _
    $region123: #{tpu_custom_call.1} parent=1 // pred_check_branch
      %213 = sbr.rel (%p210) target = $region125
    $region124: #{tpu_custom_call.1} parent=1 // pred_region
      %s228 = sand.u32 1, 7
      %p229 = scmp.eq.s32.totalorder %s228, 0
      %p230 = pneg %p229
      // Predicated region
      $region137: #{tpu_custom_call.1} parent=124 // pred_check
        _
      $region138: #{tpu_custom_call.1} parent=124 // pred_check_branch
        %232 = sbr.rel (%p229) target = $region140
      $region139: #{tpu_custom_call.1} parent=124 // pred_region
        %s233 = sand.u32 1, 7
        %s234 = ssub.s32 1, %s233
        %s235 = scalar_lea.vmem %s207, %s234
        %s236 = ssub.s32 1, %s233
        %s237 = scalar_lea.vmem %s208, %s236 [#allocation2]
        %s238 = sshllo.u32 0, %s233
        loop: start=0, step=1, limit=1
        $region141: #{tpu_custom_call.1} parent=139 // loop_pre_header
          _
        $region142: #{tpu_custom_call.1} parent=139 // loop_header
          %s240 = sphi 0, %s244
          %p241 = scmp.ge.s32.totalorder %s240, 1
          %s245 = sphi %s235, %s235
          %s246 = sphi %s237, %s237
        $region143: #{tpu_custom_call.1} parent=139 // loop_header_branch
          %243 = sbr.rel (%p241) target = $region147
        $region144: #{tpu_custom_call.1} parent=139 // loop_body
          %v247 = vld [vmem:[%s245] sm:%s238]
          %248 = vst [vmem:[%s246] sm:%s238] %v247
        $region145: #{tpu_custom_call.1} parent=139 // loop_footer
          %s244 = sadd.s32 1, %s240
        $region146: #{tpu_custom_call.1} parent=139 // loop_footer_branch
          %239 = sbr.rel target = $region142
        $region147: #{tpu_custom_call.1} parent=139 // loop_exit
          _
      $region140: #{tpu_custom_call.1} parent=124 // pred_fallthru
        _
    $region125: #{tpu_custom_call.1} parent=1 // pred_fallthru
      _
    // Predicated region
    $region126: #{tpu_custom_call.1} parent=1 // pred_check
      %p214 = pneg %p210
    $region127: #{tpu_custom_call.1} parent=1 // pred_check_branch
      %216 = sbr.rel (%p214) target = $region129
    $region128: #{tpu_custom_call.1} parent=1 // pred_region
      %s217 = sshllo.u32 0, 1
      loop: start=0, step=1, limit=1
      $region130: #{tpu_custom_call.1} parent=128 // loop_pre_header
        _
      $region131: #{tpu_custom_call.1} parent=128 // loop_header
        %s219 = sphi 0, %s223
        %p220 = scmp.ge.s32.totalorder %s219, 1
        %s224 = sphi %s207, %s207
        %s225 = sphi %s208, %s208
      $region132: #{tpu_custom_call.1} parent=128 // loop_header_branch
        %222 = sbr.rel (%p220) target = $region136
      $region133: #{tpu_custom_call.1} parent=128 // loop_body
        %v226 = vld [vmem:[%s224] sm:%s217]
        %227 = vst [vmem:[%s225] sm:%s217] %v226
      $region134: #{tpu_custom_call.1} parent=128 // loop_footer
        %s223 = sadd.s32 1, %s219
      $region135: #{tpu_custom_call.1} parent=128 // loop_footer_branch
        %218 = sbr.rel target = $region131
      $region136: #{tpu_custom_call.1} parent=128 // loop_exit
        _
    $region129: #{tpu_custom_call.1} parent=1 // pred_fallthru
      _
    // Predicated region
    $region148: #{tpu_custom_call.1} parent=1 // pred_check
      _
    $region149: #{tpu_custom_call.1} parent=1 // pred_check_branch
      %251 = sbr.rel (0) target = $region151
    $region150: #{tpu_custom_call.1} parent=1 // pred_region
      %252 = vsyncadd [#allocation3], 16
    $region151: #{tpu_custom_call.1} parent=1 // pred_fallthru
      _
    %s253 = sadd.s32 %s14, 5
    %s254 = sld [smem:[#allocation5 + %s253]]
    %s255 = scalar_lea.vmem %s1, %s254
    %s256 = scalar_lea.vmem [#allocation2], 5
    %p258 = scmp.lt.u32.totalorder 1, 8
    %p259 = pneg %p258
    // Predicated region
    $region152: #{tpu_custom_call.1} parent=1 // pred_check
      _
    $region153: #{tpu_custom_call.1} parent=1 // pred_check_branch
      %261 = sbr.rel (%p258) target = $region155
    $region154: #{tpu_custom_call.1} parent=1 // pred_region
      %s276 = sand.u32 1, 7
      %p277 = scmp.eq.s32.totalorder %s276, 0
      %p278 = pneg %p277
      // Predicated region
      $region167: #{tpu_custom_call.1} parent=154 // pred_check
        _
      $region168: #{tpu_custom_call.1} parent=154 // pred_check_branch
        %280 = sbr.rel (%p277) target = $region170
      $region169: #{tpu_custom_call.1} parent=154 // pred_region
        %s281 = sand.u32 1, 7
        %s282 = ssub.s32 1, %s281
        %s283 = scalar_lea.vmem %s255, %s282
        %s284 = ssub.s32 1, %s281
        %s285 = scalar_lea.vmem %s256, %s284 [#allocation2]
        %s286 = sshllo.u32 0, %s281
        loop: start=0, step=1, limit=1
        $region171: #{tpu_custom_call.1} parent=169 // loop_pre_header
          _
        $region172: #{tpu_custom_call.1} parent=169 // loop_header
          %s288 = sphi 0, %s292
          %p289 = scmp.ge.s32.totalorder %s288, 1
          %s293 = sphi %s283, %s283
          %s294 = sphi %s285, %s285
        $region173: #{tpu_custom_call.1} parent=169 // loop_header_branch
          %291 = sbr.rel (%p289) target = $region177
        $region174: #{tpu_custom_call.1} parent=169 // loop_body
          %v295 = vld [vmem:[%s293] sm:%s286]
          %296 = vst [vmem:[%s294] sm:%s286] %v295
        $region175: #{tpu_custom_call.1} parent=169 // loop_footer
          %s292 = sadd.s32 1, %s288
        $region176: #{tpu_custom_call.1} parent=169 // loop_footer_branch
          %287 = sbr.rel target = $region172
        $region177: #{tpu_custom_call.1} parent=169 // loop_exit
          _
      $region170: #{tpu_custom_call.1} parent=154 // pred_fallthru
        _
    $region155: #{tpu_custom_call.1} parent=1 // pred_fallthru
      _
    // Predicated region
    $region156: #{tpu_custom_call.1} parent=1 // pred_check
      %p262 = pneg %p258
    $region157: #{tpu_custom_call.1} parent=1 // pred_check_branch
      %264 = sbr.rel (%p262) target = $region159
    $region158: #{tpu_custom_call.1} parent=1 // pred_region
      %s265 = sshllo.u32 0, 1
      loop: start=0, step=1, limit=1
      $region160: #{tpu_custom_call.1} parent=158 // loop_pre_header
        _
      $region161: #{tpu_custom_call.1} parent=158 // loop_header
        %s267 = sphi 0, %s271
        %p268 = scmp.ge.s32.totalorder %s267, 1
        %s272 = sphi %s255, %s255
        %s273 = sphi %s256, %s256
      $region162: #{tpu_custom_call.1} parent=158 // loop_header_branch
        %270 = sbr.rel (%p268) target = $region166
      $region163: #{tpu_custom_call.1} parent=158 // loop_body
        %v274 = vld [vmem:[%s272] sm:%s265]
        %275 = vst [vmem:[%s273] sm:%s265] %v274
      $region164: #{tpu_custom_call.1} parent=158 // loop_footer
        %s271 = sadd.s32 1, %s267
      $region165: #{tpu_custom_call.1} parent=158 // loop_footer_branch
        %266 = sbr.rel target = $region161
      $region166: #{tpu_custom_call.1} parent=158 // loop_exit
        _
    $region159: #{tpu_custom_call.1} parent=1 // pred_fallthru
      _
    // Predicated region
    $region178: #{tpu_custom_call.1} parent=1 // pred_check
      _
    $region179: #{tpu_custom_call.1} parent=1 // pred_check_branch
      %299 = sbr.rel (0) target = $region181
    $region180: #{tpu_custom_call.1} parent=1 // pred_region
      %300 = vsyncadd [#allocation3], 16
    $region181: #{tpu_custom_call.1} parent=1 // pred_fallthru
      _
    %s301 = sadd.s32 %s14, 6
    %s302 = sld [smem:[#allocation5 + %s301]]
    %s303 = scalar_lea.vmem %s1, %s302
    %s304 = scalar_lea.vmem [#allocation2], 6
    %p306 = scmp.lt.u32.totalorder 1, 8
    %p307 = pneg %p306
    // Predicated region
    $region182: #{tpu_custom_call.1} parent=1 // pred_check
      _
    $region183: #{tpu_custom_call.1} parent=1 // pred_check_branch
      %309 = sbr.rel (%p306) target = $region185
    $region184: #{tpu_custom_call.1} parent=1 // pred_region
      %s324 = sand.u32 1, 7
      %p325 = scmp.eq.s32.totalorder %s324, 0
      %p326 = pneg %p325
      // Predicated region
      $region197: #{tpu_custom_call.1} parent=184 // pred_check
        _
      $region198: #{tpu_custom_call.1} parent=184 // pred_check_branch
        %328 = sbr.rel (%p325) target = $region200
      $region199: #{tpu_custom_call.1} parent=184 // pred_region
        %s329 = sand.u32 1, 7
        %s330 = ssub.s32 1, %s329
        %s331 = scalar_lea.vmem %s303, %s330
        %s332 = ssub.s32 1, %s329
        %s333 = scalar_lea.vmem %s304, %s332 [#allocation2]
        %s334 = sshllo.u32 0, %s329
        loop: start=0, step=1, limit=1
        $region201: #{tpu_custom_call.1} parent=199 // loop_pre_header
          _
        $region202: #{tpu_custom_call.1} parent=199 // loop_header
          %s336 = sphi 0, %s340
          %p337 = scmp.ge.s32.totalorder %s336, 1
          %s341 = sphi %s331, %s331
          %s342 = sphi %s333, %s333
        $region203: #{tpu_custom_call.1} parent=199 // loop_header_branch
          %339 = sbr.rel (%p337) target = $region207
        $region204: #{tpu_custom_call.1} parent=199 // loop_body
          %v343 = vld [vmem:[%s341] sm:%s334]
          %344 = vst [vmem:[%s342] sm:%s334] %v343
        $region205: #{tpu_custom_call.1} parent=199 // loop_footer
          %s340 = sadd.s32 1, %s336
        $region206: #{tpu_custom_call.1} parent=199 // loop_footer_branch
          %335 = sbr.rel target = $region202
        $region207: #{tpu_custom_call.1} parent=199 // loop_exit
          _
      $region200: #{tpu_custom_call.1} parent=184 // pred_fallthru
        _
    $region185: #{tpu_custom_call.1} parent=1 // pred_fallthru
      _
    // Predicated region
    $region186: #{tpu_custom_call.1} parent=1 // pred_check
      %p310 = pneg %p306
    $region187: #{tpu_custom_call.1} parent=1 // pred_check_branch
      %312 = sbr.rel (%p310) target = $region189
    $region188: #{tpu_custom_call.1} parent=1 // pred_region
      %s313 = sshllo.u32 0, 1
      loop: start=0, step=1, limit=1
      $region190: #{tpu_custom_call.1} parent=188 // loop_pre_header
        _
      $region191: #{tpu_custom_call.1} parent=188 // loop_header
        %s315 = sphi 0, %s319
        %p316 = scmp.ge.s32.totalorder %s315, 1
        %s320 = sphi %s303, %s303
        %s321 = sphi %s304, %s304
      $region192: #{tpu_custom_call.1} parent=188 // loop_header_branch
        %318 = sbr.rel (%p316) target = $region196
      $region193: #{tpu_custom_call.1} parent=188 // loop_body
        %v322 = vld [vmem:[%s320] sm:%s313]
        %323 = vst [vmem:[%s321] sm:%s313] %v322
      $region194: #{tpu_custom_call.1} parent=188 // loop_footer
        %s319 = sadd.s32 1, %s315
      $region195: #{tpu_custom_call.1} parent=188 // loop_footer_branch
        %314 = sbr.rel target = $region191
      $region196: #{tpu_custom_call.1} parent=188 // loop_exit
        _
    $region189: #{tpu_custom_call.1} parent=1 // pred_fallthru
      _
    // Predicated region
    $region208: #{tpu_custom_call.1} parent=1 // pred_check
      _
    $region209: #{tpu_custom_call.1} parent=1 // pred_check_branch
      %347 = sbr.rel (0) target = $region211
    $region210: #{tpu_custom_call.1} parent=1 // pred_region
      %348 = vsyncadd [#allocation3], 16
    $region211: #{tpu_custom_call.1} parent=1 // pred_fallthru
      _
    %s349 = sadd.s32 %s14, 7
    %s350 = sld [smem:[#allocation5 + %s349]]
    %s351 = scalar_lea.vmem %s1, %s350
    %s352 = scalar_lea.vmem [#allocation2], 7
    %p354 = scmp.lt.u32.totalorder 1, 8
    %p355 = pneg %p354
    // Predicated region
    $region212: #{tpu_custom_call.1} parent=1 // pred_check
      _
    $region213: #{tpu_custom_call.1} parent=1 // pred_check_branch
      %357 = sbr.rel (%p354) target = $region215
    $region214: #{tpu_custom_call.1} parent=1 // pred_region
      %s372 = sand.u32 1, 7
      %p373 = scmp.eq.s32.totalorder %s372, 0
      %p374 = pneg %p373
      // Predicated region
      $region227: #{tpu_custom_call.1} parent=214 // pred_check
        _
      $region228: #{tpu_custom_call.1} parent=214 // pred_check_branch
        %376 = sbr.rel (%p373) target = $region230
      $region229: #{tpu_custom_call.1} parent=214 // pred_region
        %s377 = sand.u32 1, 7
        %s378 = ssub.s32 1, %s377
        %s379 = scalar_lea.vmem %s351, %s378
        %s380 = ssub.s32 1, %s377
        %s381 = scalar_lea.vmem %s352, %s380 [#allocation2]
        %s382 = sshllo.u32 0, %s377
        loop: start=0, step=1, limit=1
        $region231: #{tpu_custom_call.1} parent=229 // loop_pre_header
          _
        $region232: #{tpu_custom_call.1} parent=229 // loop_header
          %s384 = sphi 0, %s388
          %p385 = scmp.ge.s32.totalorder %s384, 1
          %s389 = sphi %s379, %s379
          %s390 = sphi %s381, %s381
        $region233: #{tpu_custom_call.1} parent=229 // loop_header_branch
          %387 = sbr.rel (%p385) target = $region237
        $region234: #{tpu_custom_call.1} parent=229 // loop_body
          %v391 = vld [vmem:[%s389] sm:%s382]
          %392 = vst [vmem:[%s390] sm:%s382] %v391
        $region235: #{tpu_custom_call.1} parent=229 // loop_footer
          %s388 = sadd.s32 1, %s384
        $region236: #{tpu_custom_call.1} parent=229 // loop_footer_branch
          %383 = sbr.rel target = $region232
        $region237: #{tpu_custom_call.1} parent=229 // loop_exit
          _
      $region230: #{tpu_custom_call.1} parent=214 // pred_fallthru
        _
    $region215: #{tpu_custom_call.1} parent=1 // pred_fallthru
      _
    // Predicated region
    $region216: #{tpu_custom_call.1} parent=1 // pred_check
      %p358 = pneg %p354
    $region217: #{tpu_custom_call.1} parent=1 // pred_check_branch
      %360 = sbr.rel (%p358) target = $region219
    $region218: #{tpu_custom_call.1} parent=1 // pred_region
      %s361 = sshllo.u32 0, 1
      loop: start=0, step=1, limit=1
      $region220: #{tpu_custom_call.1} parent=218 // loop_pre_header
        _
      $region221: #{tpu_custom_call.1} parent=218 // loop_header
        %s363 = sphi 0, %s367
        %p364 = scmp.ge.s32.totalorder %s363, 1
        %s368 = sphi %s351, %s351
        %s369 = sphi %s352, %s352
      $region222: #{tpu_custom_call.1} parent=218 // loop_header_branch
        %366 = sbr.rel (%p364) target = $region226
      $region223: #{tpu_custom_call.1} parent=218 // loop_body
        %v370 = vld [vmem:[%s368] sm:%s361]
        %371 = vst [vmem:[%s369] sm:%s361] %v370
      $region224: #{tpu_custom_call.1} parent=218 // loop_footer
        %s367 = sadd.s32 1, %s363
      $region225: #{tpu_custom_call.1} parent=218 // loop_footer_branch
        %362 = sbr.rel target = $region221
      $region226: #{tpu_custom_call.1} parent=218 // loop_exit
        _
    $region219: #{tpu_custom_call.1} parent=1 // pred_fallthru
      _
    // Predicated region
    $region238: #{tpu_custom_call.1} parent=1 // pred_check
      _
    $region239: #{tpu_custom_call.1} parent=1 // pred_check_branch
      %395 = sbr.rel (0) target = $region241
    $region240: #{tpu_custom_call.1} parent=1 // pred_region
      %396 = vsyncadd [#allocation3], 16
    $region241: #{tpu_custom_call.1} parent=1 // pred_fallthru
      _
    %s397 = sadd.s32 %s14, 8
    %s398 = sld [smem:[#allocation5 + %s397]]
    %s399 = scalar_lea.vmem %s1, %s398
    %s400 = scalar_lea.vmem [#allocation2], 8
    %s401 = scalar_lea.sflag [#allocation3], 1
    %p403 = scmp.lt.u32.totalorder 1, 8
    %p404 = pneg %p403
    // Predicated region
    $region242: #{tpu_custom_call.1} parent=1 // pred_check
      _
    $region243: #{tpu_custom_call.1} parent=1 // pred_check_branch
      %406 = sbr.rel (%p403) target = $region245
    $region244: #{tpu_custom_call.1} parent=1 // pred_region
      %s421 = sand.u32 1, 7
      %p422 = scmp.eq.s32.totalorder %s421, 0
      %p423 = pneg %p422
      // Predicated region
      $region257: #{tpu_custom_call.1} parent=244 // pred_check
        _
      $region258: #{tpu_custom_call.1} parent=244 // pred_check_branch
        %425 = sbr.rel (%p422) target = $region260
      $region259: #{tpu_custom_call.1} parent=244 // pred_region
        %s426 = sand.u32 1, 7
        %s427 = ssub.s32 1, %s426
        %s428 = scalar_lea.vmem %s399, %s427
        %s429 = ssub.s32 1, %s426
        %s430 = scalar_lea.vmem %s400, %s429 [#allocation2]
        %s431 = sshllo.u32 0, %s426
        loop: start=0, step=1, limit=1
        $region261: #{tpu_custom_call.1} parent=259 // loop_pre_header
          _
        $region262: #{tpu_custom_call.1} parent=259 // loop_header
          %s433 = sphi 0, %s437
          %p434 = scmp.ge.s32.totalorder %s433, 1
          %s438 = sphi %s428, %s428
          %s439 = sphi %s430, %s430
        $region263: #{tpu_custom_call.1} parent=259 // loop_header_branch
          %436 = sbr.rel (%p434) target = $region267
        $region264: #{tpu_custom_call.1} parent=259 // loop_body
          %v440 = vld [vmem:[%s438] sm:%s431]
          %441 = vst [vmem:[%s439] sm:%s431] %v440
        $region265: #{tpu_custom_call.1} parent=259 // loop_footer
          %s437 = sadd.s32 1, %s433
        $region266: #{tpu_custom_call.1} parent=259 // loop_footer_branch
          %432 = sbr.rel target = $region262
        $region267: #{tpu_custom_call.1} parent=259 // loop_exit
          _
      $region260: #{tpu_custom_call.1} parent=244 // pred_fallthru
        _
    $region245: #{tpu_custom_call.1} parent=1 // pred_fallthru
      _
    // Predicated region
    $region246: #{tpu_custom_call.1} parent=1 // pred_check
      %p407 = pneg %p403
    $region247: #{tpu_custom_call.1} parent=1 // pred_check_branch
      %409 = sbr.rel (%p407) target = $region249
    $region248: #{tpu_custom_call.1} parent=1 // pred_region
      %s410 = sshllo.u32 0, 1
      loop: start=0, step=1, limit=1
      $region250: #{tpu_custom_call.1} parent=248 // loop_pre_header
        _
      $region251: #{tpu_custom_call.1} parent=248 // loop_header
        %s412 = sphi 0, %s416
        %p413 = scmp.ge.s32.totalorder %s412, 1
        %s417 = sphi %s399, %s399
        %s418 = sphi %s400, %s400
      $region252: #{tpu_custom_call.1} parent=248 // loop_header_branch
        %415 = sbr.rel (%p413) target = $region256
      $region253: #{tpu_custom_call.1} parent=248 // loop_body
        %v419 = vld [vmem:[%s417] sm:%s410]
        %420 = vst [vmem:[%s418] sm:%s410] %v419
      $region254: #{tpu_custom_call.1} parent=248 // loop_footer
        %s416 = sadd.s32 1, %s412
      $region255: #{tpu_custom_call.1} parent=248 // loop_footer_branch
        %411 = sbr.rel target = $region251
      $region256: #{tpu_custom_call.1} parent=248 // loop_exit
        _
    $region249: #{tpu_custom_call.1} parent=1 // pred_fallthru
      _
    // Predicated region
    $region268: #{tpu_custom_call.1} parent=1 // pred_check
      _
    $region269: #{tpu_custom_call.1} parent=1 // pred_check_branch
      %444 = sbr.rel (0) target = $region271
    $region270: #{tpu_custom_call.1} parent=1 // pred_region
      %445 = vsyncadd %s401, 16
    $region271: #{tpu_custom_call.1} parent=1 // pred_fallthru
      _
    %s446 = sadd.s32 %s14, 9
    %s447 = sld [smem:[#allocation5 + %s446]]
    %s448 = scalar_lea.vmem %s1, %s447
    %s449 = scalar_lea.vmem [#allocation2], 9
    %p451 = scmp.lt.u32.totalorder 1, 8
    %p452 = pneg %p451
    // Predicated region
    $region272: #{tpu_custom_call.1} parent=1 // pred_check
      _
    $region273: #{tpu_custom_call.1} parent=1 // pred_check_branch
      %454 = sbr.rel (%p451) target = $region275
    $region274: #{tpu_custom_call.1} parent=1 // pred_region
      %s469 = sand.u32 1, 7
      %p470 = scmp.eq.s32.totalorder %s469, 0
      %p471 = pneg %p470
      // Predicated region
      $region287: #{tpu_custom_call.1} parent=274 // pred_check
        _
      $region288: #{tpu_custom_call.1} parent=274 // pred_check_branch
        %473 = sbr.rel (%p470) target = $region290
      $region289: #{tpu_custom_call.1} parent=274 // pred_region
        %s474 = sand.u32 1, 7
        %s475 = ssub.s32 1, %s474
        %s476 = scalar_lea.vmem %s448, %s475
        %s477 = ssub.s32 1, %s474
        %s478 = scalar_lea.vmem %s449, %s477 [#allocation2]
        %s479 = sshllo.u32 0, %s474
        loop: start=0, step=1, limit=1
        $region291: #{tpu_custom_call.1} parent=289 // loop_pre_header
          _
        $region292: #{tpu_custom_call.1} parent=289 // loop_header
          %s481 = sphi 0, %s485
          %p482 = scmp.ge.s32.totalorder %s481, 1
          %s486 = sphi %s476, %s476
          %s487 = sphi %s478, %s478
        $region293: #{tpu_custom_call.1} parent=289 // loop_header_branch
          %484 = sbr.rel (%p482) target = $region297
        $region294: #{tpu_custom_call.1} parent=289 // loop_body
          %v488 = vld [vmem:[%s486] sm:%s479]
          %489 = vst [vmem:[%s487] sm:%s479] %v488
        $region295: #{tpu_custom_call.1} parent=289 // loop_footer
          %s485 = sadd.s32 1, %s481
        $region296: #{tpu_custom_call.1} parent=289 // loop_footer_branch
          %480 = sbr.rel target = $region292
        $region297: #{tpu_custom_call.1} parent=289 // loop_exit
          _
      $region290: #{tpu_custom_call.1} parent=274 // pred_fallthru
        _
    $region275: #{tpu_custom_call.1} parent=1 // pred_fallthru
      _
    // Predicated region
    $region276: #{tpu_custom_call.1} parent=1 // pred_check
      %p455 = pneg %p451
    $region277: #{tpu_custom_call.1} parent=1 // pred_check_branch
      %457 = sbr.rel (%p455) target = $region279
    $region278: #{tpu_custom_call.1} parent=1 // pred_region
      %s458 = sshllo.u32 0, 1
      loop: start=0, step=1, limit=1
      $region280: #{tpu_custom_call.1} parent=278 // loop_pre_header
        _
      $region281: #{tpu_custom_call.1} parent=278 // loop_header
        %s460 = sphi 0, %s464
        %p461 = scmp.ge.s32.totalorder %s460, 1
        %s465 = sphi %s448, %s448
        %s466 = sphi %s449, %s449
      $region282: #{tpu_custom_call.1} parent=278 // loop_header_branch
        %463 = sbr.rel (%p461) target = $region286
      $region283: #{tpu_custom_call.1} parent=278 // loop_body
        %v467 = vld [vmem:[%s465] sm:%s458]
        %468 = vst [vmem:[%s466] sm:%s458] %v467
      $region284: #{tpu_custom_call.1} parent=278 // loop_footer
        %s464 = sadd.s32 1, %s460
      $region285: #{tpu_custom_call.1} parent=278 // loop_footer_branch
        %459 = sbr.rel target = $region281
      $region286: #{tpu_custom_call.1} parent=278 // loop_exit
        _
    $region279: #{tpu_custom_call.1} parent=1 // pred_fallthru
      _
    // Predicated region
    $region298: #{tpu_custom_call.1} parent=1 // pred_check
      _
    $region299: #{tpu_custom_call.1} parent=1 // pred_check_branch
      %492 = sbr.rel (0) target = $region301
    $region300: #{tpu_custom_call.1} parent=1 // pred_region
      %493 = vsyncadd %s401, 16
    $region301: #{tpu_custom_call.1} parent=1 // pred_fallthru
      _
    %s494 = sadd.s32 %s14, 10
    %s495 = sld [smem:[#allocation5 + %s494]]
    %s496 = scalar_lea.vmem %s1, %s495
    %s497 = scalar_lea.vmem [#allocation2], 10
    %p499 = scmp.lt.u32.totalorder 1, 8
    %p500 = pneg %p499
    // Predicated region
    $region302: #{tpu_custom_call.1} parent=1 // pred_check
      _
    $region303: #{tpu_custom_call.1} parent=1 // pred_check_branch
      %502 = sbr.rel (%p499) target = $region305
    $region304: #{tpu_custom_call.1} parent=1 // pred_region
      %s517 = sand.u32 1, 7
      %p518 = scmp.eq.s32.totalorder %s517, 0
      %p519 = pneg %p518
      // Predicated region
      $region317: #{tpu_custom_call.1} parent=304 // pred_check
        _
      $region318: #{tpu_custom_call.1} parent=304 // pred_check_branch
        %521 = sbr.rel (%p518) target = $region320
      $region319: #{tpu_custom_call.1} parent=304 // pred_region
        %s522 = sand.u32 1, 7
        %s523 = ssub.s32 1, %s522
        %s524 = scalar_lea.vmem %s496, %s523
        %s525 = ssub.s32 1, %s522
        %s526 = scalar_lea.vmem %s497, %s525 [#allocation2]
        %s527 = sshllo.u32 0, %s522
        loop: start=0, step=1, limit=1
        $region321: #{tpu_custom_call.1} parent=319 // loop_pre_header
          _
        $region322: #{tpu_custom_call.1} parent=319 // loop_header
          %s529 = sphi 0, %s533
          %p530 = scmp.ge.s32.totalorder %s529, 1
          %s534 = sphi %s524, %s524
          %s535 = sphi %s526, %s526
        $region323: #{tpu_custom_call.1} parent=319 // loop_header_branch
          %532 = sbr.rel (%p530) target = $region327
        $region324: #{tpu_custom_call.1} parent=319 // loop_body
          %v536 = vld [vmem:[%s534] sm:%s527]
          %537 = vst [vmem:[%s535] sm:%s527] %v536
        $region325: #{tpu_custom_call.1} parent=319 // loop_footer
          %s533 = sadd.s32 1, %s529
        $region326: #{tpu_custom_call.1} parent=319 // loop_footer_branch
          %528 = sbr.rel target = $region322
        $region327: #{tpu_custom_call.1} parent=319 // loop_exit
          _
      $region320: #{tpu_custom_call.1} parent=304 // pred_fallthru
        _
    $region305: #{tpu_custom_call.1} parent=1 // pred_fallthru
      _
    // Predicated region
    $region306: #{tpu_custom_call.1} parent=1 // pred_check
      %p503 = pneg %p499
    $region307: #{tpu_custom_call.1} parent=1 // pred_check_branch
      %505 = sbr.rel (%p503) target = $region309
    $region308: #{tpu_custom_call.1} parent=1 // pred_region
      %s506 = sshllo.u32 0, 1
      loop: start=0, step=1, limit=1
      $region310: #{tpu_custom_call.1} parent=308 // loop_pre_header
        _
      $region311: #{tpu_custom_call.1} parent=308 // loop_header
        %s508 = sphi 0, %s512
        %p509 = scmp.ge.s32.totalorder %s508, 1
        %s513 = sphi %s496, %s496
        %s514 = sphi %s497, %s497
      $region312: #{tpu_custom_call.1} parent=308 // loop_header_branch
        %511 = sbr.rel (%p509) target = $region316
      $region313: #{tpu_custom_call.1} parent=308 // loop_body
        %v515 = vld [vmem:[%s513] sm:%s506]
        %516 = vst [vmem:[%s514] sm:%s506] %v515
      $region314: #{tpu_custom_call.1} parent=308 // loop_footer
        %s512 = sadd.s32 1, %s508
      $region315: #{tpu_custom_call.1} parent=308 // loop_footer_branch
        %507 = sbr.rel target = $region311
      $region316: #{tpu_custom_call.1} parent=308 // loop_exit
        _
    $region309: #{tpu_custom_call.1} parent=1 // pred_fallthru
      _
    // Predicated region
    $region328: #{tpu_custom_call.1} parent=1 // pred_check
      _
    $region329: #{tpu_custom_call.1} parent=1 // pred_check_branch
      %540 = sbr.rel (0) target = $region331
    $region330: #{tpu_custom_call.1} parent=1 // pred_region
      %541 = vsyncadd %s401, 16
    $region331: #{tpu_custom_call.1} parent=1 // pred_fallthru
      _
    %s542 = sadd.s32 %s14, 11
    %s543 = sld [smem:[#allocation5 + %s542]]
    %s544 = scalar_lea.vmem %s1, %s543
    %s545 = scalar_lea.vmem [#allocation2], 11
    %p547 = scmp.lt.u32.totalorder 1, 8
    %p548 = pneg %p547
    // Predicated region
    $region332: #{tpu_custom_call.1} parent=1 // pred_check
      _
    $region333: #{tpu_custom_call.1} parent=1 // pred_check_branch
      %550 = sbr.rel (%p547) target = $region335
    $region334: #{tpu_custom_call.1} parent=1 // pred_region
      %s565 = sand.u32 1, 7
      %p566 = scmp.eq.s32.totalorder %s565, 0
      %p567 = pneg %p566
      // Predicated region
      $region347: #{tpu_custom_call.1} parent=334 // pred_check
        _
      $region348: #{tpu_custom_call.1} parent=334 // pred_check_branch
        %569 = sbr.rel (%p566) target = $region350
      $region349: #{tpu_custom_call.1} parent=334 // pred_region
        %s570 = sand.u32 1, 7
        %s571 = ssub.s32 1, %s570
        %s572 = scalar_lea.vmem %s544, %s571
        %s573 = ssub.s32 1, %s570
        %s574 = scalar_lea.vmem %s545, %s573 [#allocation2]
        %s575 = sshllo.u32 0, %s570
        loop: start=0, step=1, limit=1
        $region351: #{tpu_custom_call.1} parent=349 // loop_pre_header
          _
        $region352: #{tpu_custom_call.1} parent=349 // loop_header
          %s577 = sphi 0, %s581
          %p578 = scmp.ge.s32.totalorder %s577, 1
          %s582 = sphi %s572, %s572
          %s583 = sphi %s574, %s574
        $region353: #{tpu_custom_call.1} parent=349 // loop_header_branch
          %580 = sbr.rel (%p578) target = $region357
        $region354: #{tpu_custom_call.1} parent=349 // loop_body
          %v584 = vld [vmem:[%s582] sm:%s575]
          %585 = vst [vmem:[%s583] sm:%s575] %v584
        $region355: #{tpu_custom_call.1} parent=349 // loop_footer
          %s581 = sadd.s32 1, %s577
        $region356: #{tpu_custom_call.1} parent=349 // loop_footer_branch
          %576 = sbr.rel target = $region352
        $region357: #{tpu_custom_call.1} parent=349 // loop_exit
          _
      $region350: #{tpu_custom_call.1} parent=334 // pred_fallthru
        _
    $region335: #{tpu_custom_call.1} parent=1 // pred_fallthru
      _
    // Predicated region
    $region336: #{tpu_custom_call.1} parent=1 // pred_check
      %p551 = pneg %p547
    $region337: #{tpu_custom_call.1} parent=1 // pred_check_branch
      %553 = sbr.rel (%p551) target = $region339
    $region338: #{tpu_custom_call.1} parent=1 // pred_region
      %s554 = sshllo.u32 0, 1
      loop: start=0, step=1, limit=1
      $region340: #{tpu_custom_call.1} parent=338 // loop_pre_header
        _
      $region341: #{tpu_custom_call.1} parent=338 // loop_header
        %s556 = sphi 0, %s560
        %p557 = scmp.ge.s32.totalorder %s556, 1
        %s561 = sphi %s544, %s544
        %s562 = sphi %s545, %s545
      $region342: #{tpu_custom_call.1} parent=338 // loop_header_branch
        %559 = sbr.rel (%p557) target = $region346
      $region343: #{tpu_custom_call.1} parent=338 // loop_body
        %v563 = vld [vmem:[%s561] sm:%s554]
        %564 = vst [vmem:[%s562] sm:%s554] %v563
      $region344: #{tpu_custom_call.1} parent=338 // loop_footer
        %s560 = sadd.s32 1, %s556
      $region345: #{tpu_custom_call.1} parent=338 // loop_footer_branch
        %555 = sbr.rel target = $region341
      $region346: #{tpu_custom_call.1} parent=338 // loop_exit
        _
    $region339: #{tpu_custom_call.1} parent=1 // pred_fallthru
      _
    // Predicated region
    $region358: #{tpu_custom_call.1} parent=1 // pred_check
      _
    $region359: #{tpu_custom_call.1} parent=1 // pred_check_branch
      %588 = sbr.rel (0) target = $region361
    $region360: #{tpu_custom_call.1} parent=1 // pred_region
      %589 = vsyncadd %s401, 16
    $region361: #{tpu_custom_call.1} parent=1 // pred_fallthru
      _
    %s590 = sadd.s32 %s14, 12
    %s591 = sld [smem:[#allocation5 + %s590]]
    %s592 = scalar_lea.vmem %s1, %s591
    %s593 = scalar_lea.vmem [#allocation2], 12
    %p595 = scmp.lt.u32.totalorder 1, 8
    %p596 = pneg %p595
    // Predicated region
    $region362: #{tpu_custom_call.1} parent=1 // pred_check
      _
    $region363: #{tpu_custom_call.1} parent=1 // pred_check_branch
      %598 = sbr.rel (%p595) target = $region365
    $region364: #{tpu_custom_call.1} parent=1 // pred_region
      %s613 = sand.u32 1, 7
      %p614 = scmp.eq.s32.totalorder %s613, 0
      %p615 = pneg %p614
      // Predicated region
      $region377: #{tpu_custom_call.1} parent=364 // pred_check
        _
      $region378: #{tpu_custom_call.1} parent=364 // pred_check_branch
        %617 = sbr.rel (%p614) target = $region380
      $region379: #{tpu_custom_call.1} parent=364 // pred_region
        %s618 = sand.u32 1, 7
        %s619 = ssub.s32 1, %s618
        %s620 = scalar_lea.vmem %s592, %s619
        %s621 = ssub.s32 1, %s618
        %s622 = scalar_lea.vmem %s593, %s621 [#allocation2]
        %s623 = sshllo.u32 0, %s618
        loop: start=0, step=1, limit=1
        $region381: #{tpu_custom_call.1} parent=379 // loop_pre_header
          _
        $region382: #{tpu_custom_call.1} parent=379 // loop_header
          %s625 = sphi 0, %s629
          %p626 = scmp.ge.s32.totalorder %s625, 1
          %s630 = sphi %s620, %s620
          %s631 = sphi %s622, %s622
        $region383: #{tpu_custom_call.1} parent=379 // loop_header_branch
          %628 = sbr.rel (%p626) target = $region387
        $region384: #{tpu_custom_call.1} parent=379 // loop_body
          %v632 = vld [vmem:[%s630] sm:%s623]
          %633 = vst [vmem:[%s631] sm:%s623] %v632
        $region385: #{tpu_custom_call.1} parent=379 // loop_footer
          %s629 = sadd.s32 1, %s625
        $region386: #{tpu_custom_call.1} parent=379 // loop_footer_branch
          %624 = sbr.rel target = $region382
        $region387: #{tpu_custom_call.1} parent=379 // loop_exit
          _
      $region380: #{tpu_custom_call.1} parent=364 // pred_fallthru
        _
    $region365: #{tpu_custom_call.1} parent=1 // pred_fallthru
      _
    // Predicated region
    $region366: #{tpu_custom_call.1} parent=1 // pred_check
      %p599 = pneg %p595
    $region367: #{tpu_custom_call.1} parent=1 // pred_check_branch
      %601 = sbr.rel (%p599) target = $region369
    $region368: #{tpu_custom_call.1} parent=1 // pred_region
      %s602 = sshllo.u32 0, 1
      loop: start=0, step=1, limit=1
      $region370: #{tpu_custom_call.1} parent=368 // loop_pre_header
        _
      $region371: #{tpu_custom_call.1} parent=368 // loop_header
        %s604 = sphi 0, %s608
        %p605 = scmp.ge.s32.totalorder %s604, 1
        %s609 = sphi %s592, %s592
        %s610 = sphi %s593, %s593
      $region372: #{tpu_custom_call.1} parent=368 // loop_header_branch
        %607 = sbr.rel (%p605) target = $region376
      $region373: #{tpu_custom_call.1} parent=368 // loop_body
        %v611 = vld [vmem:[%s609] sm:%s602]
        %612 = vst [vmem:[%s610] sm:%s602] %v611
      $region374: #{tpu_custom_call.1} parent=368 // loop_footer
        %s608 = sadd.s32 1, %s604
      $region375: #{tpu_custom_call.1} parent=368 // loop_footer_branch
        %603 = sbr.rel target = $region371
      $region376: #{tpu_custom_call.1} parent=368 // loop_exit
        _
    $region369: #{tpu_custom_call.1} parent=1 // pred_fallthru
      _
    // Predicated region
    $region388: #{tpu_custom_call.1} parent=1 // pred_check
      _
    $region389: #{tpu_custom_call.1} parent=1 // pred_check_branch
      %636 = sbr.rel (0) target = $region391
    $region390: #{tpu_custom_call.1} parent=1 // pred_region
      %637 = vsyncadd %s401, 16
    $region391: #{tpu_custom_call.1} parent=1 // pred_fallthru
      _
    %s638 = sadd.s32 %s14, 13
    %s639 = sld [smem:[#allocation5 + %s638]]
    %s640 = scalar_lea.vmem %s1, %s639
    %s641 = scalar_lea.vmem [#allocation2], 13
    %p643 = scmp.lt.u32.totalorder 1, 8
    %p644 = pneg %p643
    // Predicated region
    $region392: #{tpu_custom_call.1} parent=1 // pred_check
      _
    $region393: #{tpu_custom_call.1} parent=1 // pred_check_branch
      %646 = sbr.rel (%p643) target = $region395
    $region394: #{tpu_custom_call.1} parent=1 // pred_region
      %s661 = sand.u32 1, 7
      %p662 = scmp.eq.s32.totalorder %s661, 0
      %p663 = pneg %p662
      // Predicated region
      $region407: #{tpu_custom_call.1} parent=394 // pred_check
        _
      $region408: #{tpu_custom_call.1} parent=394 // pred_check_branch
        %665 = sbr.rel (%p662) target = $region410
      $region409: #{tpu_custom_call.1} parent=394 // pred_region
        %s666 = sand.u32 1, 7
        %s667 = ssub.s32 1, %s666
        %s668 = scalar_lea.vmem %s640, %s667
        %s669 = ssub.s32 1, %s666
        %s670 = scalar_lea.vmem %s641, %s669 [#allocation2]
        %s671 = sshllo.u32 0, %s666
        loop: start=0, step=1, limit=1
        $region411: #{tpu_custom_call.1} parent=409 // loop_pre_header
          _
        $region412: #{tpu_custom_call.1} parent=409 // loop_header
          %s673 = sphi 0, %s677
          %p674 = scmp.ge.s32.totalorder %s673, 1
          %s678 = sphi %s668, %s668
          %s679 = sphi %s670, %s670
        $region413: #{tpu_custom_call.1} parent=409 // loop_header_branch
          %676 = sbr.rel (%p674) target = $region417
        $region414: #{tpu_custom_call.1} parent=409 // loop_body
          %v680 = vld [vmem:[%s678] sm:%s671]
          %681 = vst [vmem:[%s679] sm:%s671] %v680
        $region415: #{tpu_custom_call.1} parent=409 // loop_footer
          %s677 = sadd.s32 1, %s673
        $region416: #{tpu_custom_call.1} parent=409 // loop_footer_branch
          %672 = sbr.rel target = $region412
        $region417: #{tpu_custom_call.1} parent=409 // loop_exit
          _
      $region410: #{tpu_custom_call.1} parent=394 // pred_fallthru
        _
    $region395: #{tpu_custom_call.1} parent=1 // pred_fallthru
      _
    // Predicated region
    $region396: #{tpu_custom_call.1} parent=1 // pred_check
      %p647 = pneg %p643
    $region397: #{tpu_custom_call.1} parent=1 // pred_check_branch
      %649 = sbr.rel (%p647) target = $region399
    $region398: #{tpu_custom_call.1} parent=1 // pred_region
      %s650 = sshllo.u32 0, 1
      loop: start=0, step=1, limit=1
      $region400: #{tpu_custom_call.1} parent=398 // loop_pre_header
        _
      $region401: #{tpu_custom_call.1} parent=398 // loop_header
        %s652 = sphi 0, %s656
        %p653 = scmp.ge.s32.totalorder %s652, 1
        %s657 = sphi %s640, %s640
        %s658 = sphi %s641, %s641
      $region402: #{tpu_custom_call.1} parent=398 // loop_header_branch
        %655 = sbr.rel (%p653) target = $region406
      $region403: #{tpu_custom_call.1} parent=398 // loop_body
        %v659 = vld [vmem:[%s657] sm:%s650]
        %660 = vst [vmem:[%s658] sm:%s650] %v659
      $region404: #{tpu_custom_call.1} parent=398 // loop_footer
        %s656 = sadd.s32 1, %s652
      $region405: #{tpu_custom_call.1} parent=398 // loop_footer_branch
        %651 = sbr.rel target = $region401
      $region406: #{tpu_custom_call.1} parent=398 // loop_exit
        _
    $region399: #{tpu_custom_call.1} parent=1 // pred_fallthru
      _
    // Predicated region
    $region418: #{tpu_custom_call.1} parent=1 // pred_check
      _
    $region419: #{tpu_custom_call.1} parent=1 // pred_check_branch
      %684 = sbr.rel (0) target = $region421
    $region420: #{tpu_custom_call.1} parent=1 // pred_region
      %685 = vsyncadd %s401, 16
    $region421: #{tpu_custom_call.1} parent=1 // pred_fallthru
      _
    %s686 = sadd.s32 %s14, 14
    %s687 = sld [smem:[#allocation5 + %s686]]
    %s688 = scalar_lea.vmem %s1, %s687
    %s689 = scalar_lea.vmem [#allocation2], 14
    %p691 = scmp.lt.u32.totalorder 1, 8
    %p692 = pneg %p691
    // Predicated region
    $region422: #{tpu_custom_call.1} parent=1 // pred_check
      _
    $region423: #{tpu_custom_call.1} parent=1 // pred_check_branch
      %694 = sbr.rel (%p691) target = $region425
    $region424: #{tpu_custom_call.1} parent=1 // pred_region
      %s709 = sand.u32 1, 7
      %p710 = scmp.eq.s32.totalorder %s709, 0
      %p711 = pneg %p710
      // Predicated region
      $region437: #{tpu_custom_call.1} parent=424 // pred_check
        _
      $region438: #{tpu_custom_call.1} parent=424 // pred_check_branch
        %713 = sbr.rel (%p710) target = $region440
      $region439: #{tpu_custom_call.1} parent=424 // pred_region
        %s714 = sand.u32 1, 7
        %s715 = ssub.s32 1, %s714
        %s716 = scalar_lea.vmem %s688, %s715
        %s717 = ssub.s32 1, %s714
        %s718 = scalar_lea.vmem %s689, %s717 [#allocation2]
        %s719 = sshllo.u32 0, %s714
        loop: start=0, step=1, limit=1
        $region441: #{tpu_custom_call.1} parent=439 // loop_pre_header
          _
        $region442: #{tpu_custom_call.1} parent=439 // loop_header
          %s721 = sphi 0, %s725
          %p722 = scmp.ge.s32.totalorder %s721, 1
          %s726 = sphi %s716, %s716
          %s727 = sphi %s718, %s718
        $region443: #{tpu_custom_call.1} parent=439 // loop_header_branch
          %724 = sbr.rel (%p722) target = $region447
        $region444: #{tpu_custom_call.1} parent=439 // loop_body
          %v728 = vld [vmem:[%s726] sm:%s719]
          %729 = vst [vmem:[%s727] sm:%s719] %v728
        $region445: #{tpu_custom_call.1} parent=439 // loop_footer
          %s725 = sadd.s32 1, %s721
        $region446: #{tpu_custom_call.1} parent=439 // loop_footer_branch
          %720 = sbr.rel target = $region442
        $region447: #{tpu_custom_call.1} parent=439 // loop_exit
          _
      $region440: #{tpu_custom_call.1} parent=424 // pred_fallthru
        _
    $region425: #{tpu_custom_call.1} parent=1 // pred_fallthru
      _
    // Predicated region
    $region426: #{tpu_custom_call.1} parent=1 // pred_check
      %p695 = pneg %p691
    $region427: #{tpu_custom_call.1} parent=1 // pred_check_branch
      %697 = sbr.rel (%p695) target = $region429
    $region428: #{tpu_custom_call.1} parent=1 // pred_region
      %s698 = sshllo.u32 0, 1
      loop: start=0, step=1, limit=1
      $region430: #{tpu_custom_call.1} parent=428 // loop_pre_header
        _
      $region431: #{tpu_custom_call.1} parent=428 // loop_header
        %s700 = sphi 0, %s704
        %p701 = scmp.ge.s32.totalorder %s700, 1
        %s705 = sphi %s688, %s688
        %s706 = sphi %s689, %s689
      $region432: #{tpu_custom_call.1} parent=428 // loop_header_branch
        %703 = sbr.rel (%p701) target = $region436
      $region433: #{tpu_custom_call.1} parent=428 // loop_body
        %v707 = vld [vmem:[%s705] sm:%s698]
        %708 = vst [vmem:[%s706] sm:%s698] %v707
      $region434: #{tpu_custom_call.1} parent=428 // loop_footer
        %s704 = sadd.s32 1, %s700
      $region435: #{tpu_custom_call.1} parent=428 // loop_footer_branch
        %699 = sbr.rel target = $region431
      $region436: #{tpu_custom_call.1} parent=428 // loop_exit
        _
    $region429: #{tpu_custom_call.1} parent=1 // pred_fallthru
      _
    // Predicated region
    $region448: #{tpu_custom_call.1} parent=1 // pred_check
      _
    $region449: #{tpu_custom_call.1} parent=1 // pred_check_branch
      %732 = sbr.rel (0) target = $region451
    $region450: #{tpu_custom_call.1} parent=1 // pred_region
      %733 = vsyncadd %s401, 16
    $region451: #{tpu_custom_call.1} parent=1 // pred_fallthru
      _
    %s734 = sadd.s32 %s14, 15
    %s735 = sld [smem:[#allocation5 + %s734]]
    %s736 = scalar_lea.vmem %s1, %s735
    %s737 = scalar_lea.vmem [#allocation2], 15
    %p739 = scmp.lt.u32.totalorder 1, 8
    %p740 = pneg %p739
    // Predicated region
    $region452: #{tpu_custom_call.1} parent=1 // pred_check
      _
    $region453: #{tpu_custom_call.1} parent=1 // pred_check_branch
      %742 = sbr.rel (%p739) target = $region455
    $region454: #{tpu_custom_call.1} parent=1 // pred_region
      %s757 = sand.u32 1, 7
      %p758 = scmp.eq.s32.totalorder %s757, 0
      %p759 = pneg %p758
      // Predicated region
      $region467: #{tpu_custom_call.1} parent=454 // pred_check
        _
      $region468: #{tpu_custom_call.1} parent=454 // pred_check_branch
        %761 = sbr.rel (%p758) target = $region470
      $region469: #{tpu_custom_call.1} parent=454 // pred_region
        %s762 = sand.u32 1, 7
        %s763 = ssub.s32 1, %s762
        %s764 = scalar_lea.vmem %s736, %s763
        %s765 = ssub.s32 1, %s762
        %s766 = scalar_lea.vmem %s737, %s765 [#allocation2]
        %s767 = sshllo.u32 0, %s762
        loop: start=0, step=1, limit=1
        $region471: #{tpu_custom_call.1} parent=469 // loop_pre_header
          _
        $region472: #{tpu_custom_call.1} parent=469 // loop_header
          %s769 = sphi 0, %s773
          %p770 = scmp.ge.s32.totalorder %s769, 1
          %s774 = sphi %s764, %s764
          %s775 = sphi %s766, %s766
        $region473: #{tpu_custom_call.1} parent=469 // loop_header_branch
          %772 = sbr.rel (%p770) target = $region477
        $region474: #{tpu_custom_call.1} parent=469 // loop_body
          %v776 = vld [vmem:[%s774] sm:%s767]
          %777 = vst [vmem:[%s775] sm:%s767] %v776
        $region475: #{tpu_custom_call.1} parent=469 // loop_footer
          %s773 = sadd.s32 1, %s769
        $region476: #{tpu_custom_call.1} parent=469 // loop_footer_branch
          %768 = sbr.rel target = $region472
        $region477: #{tpu_custom_call.1} parent=469 // loop_exit
          _
      $region470: #{tpu_custom_call.1} parent=454 // pred_fallthru
        _
    $region455: #{tpu_custom_call.1} parent=1 // pred_fallthru
      _
    // Predicated region
    $region456: #{tpu_custom_call.1} parent=1 // pred_check
      %p743 = pneg %p739
    $region457: #{tpu_custom_call.1} parent=1 // pred_check_branch
      %745 = sbr.rel (%p743) target = $region459
    $region458: #{tpu_custom_call.1} parent=1 // pred_region
      %s746 = sshllo.u32 0, 1
      loop: start=0, step=1, limit=1
      $region460: #{tpu_custom_call.1} parent=458 // loop_pre_header
        _
      $region461: #{tpu_custom_call.1} parent=458 // loop_header
        %s748 = sphi 0, %s752
        %p749 = scmp.ge.s32.totalorder %s748, 1
        %s753 = sphi %s736, %s736
        %s754 = sphi %s737, %s737
      $region462: #{tpu_custom_call.1} parent=458 // loop_header_branch
        %751 = sbr.rel (%p749) target = $region466
      $region463: #{tpu_custom_call.1} parent=458 // loop_body
        %v755 = vld [vmem:[%s753] sm:%s746]
        %756 = vst [vmem:[%s754] sm:%s746] %v755
      $region464: #{tpu_custom_call.1} parent=458 // loop_footer
        %s752 = sadd.s32 1, %s748
      $region465: #{tpu_custom_call.1} parent=458 // loop_footer_branch
        %747 = sbr.rel target = $region461
      $region466: #{tpu_custom_call.1} parent=458 // loop_exit
        _
    $region459: #{tpu_custom_call.1} parent=1 // pred_fallthru
      _
    // Predicated region
    $region478: #{tpu_custom_call.1} parent=1 // pred_check
      _
    $region479: #{tpu_custom_call.1} parent=1 // pred_check_branch
      %780 = sbr.rel (0) target = $region481
    $region480: #{tpu_custom_call.1} parent=1 // pred_region
      %781 = vsyncadd %s401, 16
    $region481: #{tpu_custom_call.1} parent=1 // pred_fallthru
      _
    %783 = dma.done [#allocation3], 16
    %785 = dma.done [#allocation3], 16
    %787 = dma.done [#allocation3], 16
    %789 = dma.done [#allocation3], 16
    %791 = dma.done [#allocation3], 16
    %793 = dma.done [#allocation3], 16
    %795 = dma.done [#allocation3], 16
    %797 = dma.done [#allocation3], 16
    %v798 = vld [vmem:[#allocation2] sm:$0xff]
    %v799 = vmul.f32 %v798, 5.656854
    %vm800 = vcmask 261120
    %801 = vst.msk [vmem:[#allocation6] sm:$0xff] %vm800, %v799
    %803 = dma.done %s401, 16
    %805 = dma.done %s401, 16
    %807 = dma.done %s401, 16
    %809 = dma.done %s401, 16
    %811 = dma.done %s401, 16
    %813 = dma.done %s401, 16
    %815 = dma.done %s401, 16
    %817 = dma.done %s401, 16
    %v818 = vld [vmem:[#allocation2 + $0x8] sm:$0xff]
    %v819 = vmul.f32 %v818, 5.656854
    %820 = vst.msk [vmem:[#allocation6 + $0x8] sm:$0xff] %vm800, %v819
    // Predicated region
    $region482: #{tpu_custom_call.1} parent=1 // pred_check
      _
    $region483: #{tpu_custom_call.1} parent=1 // pred_check_branch
      %822 = sbr.rel (0) target = $region485
    $region484: #{tpu_custom_call.1} parent=1 // pred_region
      %s824 = ssub.s32 256, 256
      %825 = vsyncadd [#allocation7], %s824
      %s826 = sshll.u32 [#allocation6], 4
      %s827 = int_to_ptr.vmem [resolvable:$true] %s826
      %832 = dma.vmem_to_hbm [thread:$0]  %s827, 256, %s2, [#allocation7], 128, 128, 8
    $region485: #{tpu_custom_call.1} parent=1 // pred_fallthru
      _
    // Predicated region
    $region486: #{tpu_custom_call.1} parent=1 // pred_check
      _
    $region487: #{tpu_custom_call.1} parent=1 // pred_check_branch
      %834 = sbr.rel (0) target = $region489
    $region488: #{tpu_custom_call.1} parent=1 // pred_region
      %835 = dma.done [#allocation7], 256
    $region489: #{tpu_custom_call.1} parent=1 // pred_fallthru
      _
    %836 = vsyncpa [#allocation7], 1
  %837 = vsyncmov [#allocation3]
  %s838 = vpop.sfrf %837
  %p839 = scmp.eq.s32.totalorder %s838, 0
  %p840 = pneg %p839
  %842 = shalt.err (%p840)
  %s843 = scalar_lea.sflag [#allocation3], 1
  %844 = vsyncmov %s843
  %s845 = vpop.sfrf %844
  %p846 = scmp.eq.s32.totalorder %s845, 0
  %p847 = pneg %p846
  %849 = shalt.err (%p847)

</llo_original>
